<compile_context>
chip_gen: v7x
topology: tpu7x:2x2x1
jax: 0.10.0
libtpu: 0.0.40
codegen_flags: <defaults>
</compile_context>

<pallas_src>
import numpy as np
import jax
import jax.numpy as jnp
from jax import lax
from jax.experimental import pallas as pl
from jax.experimental.pallas import tpu as pltpu


def _make_kernel(n_tokens, patch_num, p_pad, r2, sim_top, num_classes,
                 eps_gate=1e-6, ln_eps=1e-6, cos_eps=1e-8):
    """Feature-select kernel (C == 1, eval path; python loop breaks after batch 0)."""
    neg_big = -1e30

    def kernel(oriT_ref, ori_pd_ref, augT_ref, w_ref, gamma_ref, beta_ref,
               fcw_ref, fcb_ref, mask_ref, out_ref):
        oriT = oriT_ref[...]                       # (D, N_pad)  lane-major, all batches
        ori_pd = ori_pd_ref[...]                   # (P_pad, D)  token-major, batch 0
        w_row = w_ref[...]                         # (1, D)      w_feature_select^T

        # clean_logits = ori_tokens @ w_feature_select, lane-major (1, N_pad).
        logits = jnp.dot(w_row, oriT, preferred_element_type=jnp.float32)

        # nn.Softmax(0): softmax over ALL tokens (all batches together).
        n_pad = logits.shape[1]
        nlane = lax.broadcasted_iota(jnp.int32, (1, n_pad), 1)
        valid_n = nlane < n_tokens
        m = jnp.max(jnp.where(valid_n, logits, neg_big), axis=1, keepdims=True)
        e = jnp.where(valid_n, jnp.exp(logits - m), 0.0)
        inv_z = pl.reciprocal(jnp.sum(e, axis=1, keepdims=True), approx=True)

        # Batch 0 only (python loop in feature_select() breaks after first batch).
        plane = lax.broadcasted_iota(jnp.int32, (1, p_pad), 1)
        valid_p = plane < patch_num
        bl = jnp.where(valid_p, e[:, :p_pad] * inv_z, 0.0)        # (1, P_pad) probs

        # C == 1: topk over all P + scatter back == renormalize by the sum (+eps).
        g = bl * pl.reciprocal(jnp.sum(bl, axis=1, keepdims=True) + eps_gate,
                               approx=True)                       # (1, P_pad) gates

        # contrast_loss = sqrt(sum(((aug - ori) * gates) ** 2)); gates==0 on pad lanes.
        oriT_p = oriT[:, :p_pad]                                  # (D, P_pad)
        augT_p = augT_ref[...]                                    # (D, P_pad)
        diff = (augT_p - oriT_p) * g
        c_sum = jnp.sum(jnp.sum(diff * diff, axis=1, keepdims=True),
                        axis=0, keepdims=True)
        contrast = jnp.sqrt(c_sum)                                # (1, 1)

        # entrop_loss[0] = p0 * log(p0), p = softmax(norm_batch_logist, dim=0);
        # reference returns element 0 only, same (positive) sign as the module.
        gm = jnp.max(g, axis=1, keepdims=True)
        ee = jnp.where(valid_p, jnp.exp(g - gm), 0.0)
        zz = jnp.sum(ee, axis=1, keepdims=True)
        p0 = ee[:, 0:1] * pl.reciprocal(zz, approx=True)
        ent = p0 * ((g[:, 0:1] - gm) - jnp.log(zz))               # (1, 1)

        # ---- rank-by-counting top-(0.1*P) (replaces the serial argmax loop) -------
        # rank[n] = #{m : key[m] > key[n]} + #{m : key[m] == key[n], m < n}.
        # Row key from the logits matmul, column key from a VPU lane-reduce; the
        # diagonal is masked so 1-ulp disagreement between the two cannot self-count.
        # (Cross-token exact ties are broken by index, like the reference's topk.)
        key_row = jnp.where(valid_p, logits[:, :p_pad], neg_big)  # (1, P_pad)
        mrow = lax.broadcasted_iota(jnp.int32, (p_pad, 1), 0)
        key_col = jnp.where(mrow < patch_num,
                            jnp.sum(ori_pd * w_row, axis=1, keepdims=True),
                            neg_big)                              # (P_pad, 1)
        m_idx = lax.broadcasted_iota(jnp.int32, (p_pad, p_pad), 0)
        n_idx = lax.broadcasted_iota(jnp.int32, (p_pad, p_pad), 1)
        gt = key_col > key_row
        tie = (key_col == key_row) & (m_idx < n_idx)
        cnt = jnp.where((gt & (m_idx != n_idx)) | tie, 1.0, 0.0)  # (P_pad, P_pad)
        rank = jnp.sum(cnt, axis=0, keepdims=True).astype(jnp.int32)   # (1, P_pad)

        # ---- fused (gates + rank-selection) x tokens matmul (canonical m,k x k,n) --
        # row 0 -> temp_token = sum_p gates_p * token_p ; rows 1..sim_top -> top-k
        # tokens in rank order ; rows > sim_top stay zero.
        r_s = lax.broadcasted_iota(jnp.int32, (r2, p_pad), 0)
        sel_hit = (r_s >= 1) & (r_s <= sim_top) & ((r_s - 1) == rank)
        lhs = jnp.where(r_s == 0, g, jnp.where(sel_hit, 1.0, 0.0))     # (R2, P_pad)
        fused = jnp.dot(lhs, ori_pd, preferred_element_type=jnp.float32)  # (R2, D)

        temp = fused[0:1, :]                                      # (1, D)

        # LayerNorm(hidden, eps=1e-6) + fc (weights passed as (D, 128), zero-padded).
        mean = jnp.mean(temp, axis=1, keepdims=True)
        var = jnp.mean((temp - mean) ** 2, axis=1, keepdims=True)
        ln = (temp - mean) * lax.rsqrt(var + ln_eps) * gamma_ref[...] + beta_ref[...]
        y128 = jnp.dot(ln, fcw_ref[...],
                       preferred_element_type=jnp.float32) + fcb_ref[...]  # (1, 128)

        # Pairwise cosines: normalized Gram of the fused rows, summed against the
        # static (anchor, other) pair mask (offset by +1 for the gates row; per-vector
        # eps clamp instead of torch's clamp on the norm product — equivalent unless a
        # selected token is near-zero).
        sq = jnp.sum(fused * fused, axis=1, keepdims=True)
        gn = fused * lax.rsqrt(jnp.maximum(sq, cos_eps * cos_eps))
        cos = lax.dot_general(gn, gn, dimension_numbers=(((1,), (1,)), ((), ())),
                              preferred_element_type=jnp.float32)       # (R2, R2)
        # reference: sum of the 15 pair cosines / sim_top (= top_k_indices.size(0)).
        sim = jnp.sum(jnp.sum(cos * mask_ref[...], axis=1, keepdims=True),
                      axis=0, keepdims=True) * (1.0 / sim_top)          # (1, 1)

        # ---- pack everything into one lane-dense (1, 128) output row ---------------
        clane = lax.broadcasted_iota(jnp.int32, (1, 128), 1)
        out = y128
        out = out + jnp.where(clane == num_classes, sim, 0.0)
        out = out + jnp.where(clane == num_classes + 1, contrast, 0.0)
        out = out + jnp.where(clane == num_classes + 2, ent, 0.0)
        out_ref[...] = out

    return kernel


def feature_select_forward(ori_tokens, aug_tokens, w_fs, ln_gamma, ln_beta,
                           fc_w, fc_b, *, patch_num, perm):
    """Returns (y, similiay_loss[0], contrast_loss, entrop_loss[0])."""
    n_tokens, d = ori_tokens.shape
    num_classes = fc_w.shape[0]
    assert num_classes + 3 <= 128, "outputs are packed into a single 128-lane row"

    sim_top = int(0.1 * patch_num)
    r2 = ((1 + sim_top + 7) // 8) * 8                 # gates row + sim_top sel rows
    p_pad = ((patch_num + 127) // 128) * 128
    n_pad = max(((n_tokens + 127) // 128) * 128, p_pad)

    f32 = jnp.float32
    ori = ori_tokens.astype(f32)
    # (D, N_pad) lane-major, ALL tokens (the softmax runs over every batch's tokens).
    oriT = jnp.pad(jnp.transpose(ori), ((0, 0), (0, n_pad - n_tokens)))
    # (P_pad, D) token-major batch-0 copy: canonical RHS of the fused select matmul.
    ori_pd = jnp.pad(ori[:patch_num], ((0, p_pad - patch_num), (0, 0)))
    # aug tokens: only batch 0 is ever read -> slice before transposing/padding.
    aug0 = aug_tokens[:patch_num].astype(f32)
    augT = jnp.pad(jnp.transpose(aug0), ((0, 0), (0, p_pad - patch_num)))

    w_row = jnp.reshape(w_fs.astype(f32), (1, d))
    gamma = jnp.reshape(ln_gamma.astype(f32), (1, d))
    beta = jnp.reshape(ln_beta.astype(f32), (1, d))
    # fc weights in canonical (D, 128) orientation, zero-padded output lanes.
    fcw_pad = jnp.pad(jnp.transpose(fc_w.astype(f32)),
                      ((0, 0), (0, 128 - num_classes)))
    fcb_pad = jnp.pad(jnp.reshape(fc_b.astype(f32), (1, num_classes)),
                      ((0, 0), (0, 128 - num_classes)))

    # Static (anchor, other) cosine-pair mask from the fixed permutation `perm`
    # (torch.split(shuffled, sim_top // 3) -> chunks 6, 6, 6, 1 for sim_top = 19),
    # offset by +1 because row 0 of the fused matmul is the gates row.
    chunk = max(1, sim_top // 3)
    mask_np = np.zeros((r2, r2), np.float32)
    for st in range(0, sim_top, chunk):
        en = min(st + chunk, sim_top)
        for i in range(st + 1, en):
            mask_np[perm[st] + 1, perm[i] + 1] += 1.0
    pair_mask = jnp.asarray(mask_np)

    kernel = _make_kernel(n_tokens, patch_num, p_pad, r2, sim_top, num_classes)

    def full(shape):
        return pl.BlockSpec(shape, lambda i: (0, 0))

    out = pl.pallas_call(
        kernel,
        out_shape=jax.ShapeDtypeStruct((1, 128), jnp.float32),
        grid=(1,),
        in_specs=[full((d, n_pad)),       # oriT: softmax needs all N tokens
                  full((p_pad, d)),       # batch-0 tokens, token-major
                  full((d, p_pad)),       # aug batch-0 slab
                  full((1, d)), full((1, d)), full((1, d)),
                  full((d, 128)), full((1, 128)),
                  full((r2, r2))],
        out_specs=full((1, 128)),
        compiler_params=pltpu.CompilerParams(dimension_semantics=("arbitrary",)),
    )(oriT, ori_pd, augT, w_row, gamma, beta, fcw_pad, fcb_pad, pair_mask)

    y = out[:, :num_classes]              # (1, num_classes)
    sim = out[0, num_classes]
    contrast = out[0, num_classes + 1]
    ent = out[0, num_classes + 2]
    return y, sim, contrast, ent


if __name__ == "__main__":
    key = jax.random.PRNGKey(0)
    batch, patch_num, hidden, num_classes = 2, 196, 32, 10
    n = batch * patch_num

    ks = jax.random.split(key, 6)
    # Stand-ins for vit(origin_x) / vit(aug_x) patch-token outputs, flattened to (N, D).
    ori_tokens = jax.random.normal(ks[0], (n, hidden), jnp.float32)
    aug_tokens = ori_tokens + 0.05 * jax.random.normal(ks[1], (n, hidden), jnp.float32)

    # Module parameters (w_feature_select (D, 1), LayerNorm(D), fc: D -> C).
    w_fs = 0.1 * jax.random.normal(ks[2], (hidden, 1), jnp.float32)
    ln_gamma = jnp.ones((hidden,), jnp.float32)
    ln_beta = jnp.zeros((hidden,), jnp.float32)
    fc_w = 0.1 * jax.random.normal(ks[3], (num_classes, hidden), jnp.float32)
    fc_b = 0.01 * jax.random.normal(ks[4], (num_classes,), jnp.float32)

    sim_top = int(0.1 * patch_num)  # 19, matches self.indices = torch.randperm(19)
    perm = tuple(int(v) for v in jax.random.permutation(ks[5], sim_top))

    fwd = jax.jit(feature_select_forward, static_argnames=("patch_num", "perm"))
    outs = fwd(ori_tokens, aug_tokens, w_fs, ln_gamma, ln_beta, fc_w, fc_b,
               patch_num=patch_num, perm=perm)
    jax.block_until_ready(outs)
    print("KERNEL_OK")
</pallas_src>

<mosaic_0001>
module attributes {stable_mosaic.version = 11 : i64} {
  func.func @kernel(%arg0: i32, %arg1: memref<32x512xf32, #tpu.memory_space<vmem>>, %arg2: memref<256x32xf32, #tpu.memory_space<vmem>>, %arg3: memref<32x256xf32, #tpu.memory_space<vmem>>, %arg4: memref<1x32xf32, #tpu.memory_space<vmem>>, %arg5: memref<1x32xf32, #tpu.memory_space<vmem>>, %arg6: memref<1x32xf32, #tpu.memory_space<vmem>>, %arg7: memref<32x128xf32, #tpu.memory_space<vmem>>, %arg8: memref<1x128xf32, #tpu.memory_space<vmem>>, %arg9: memref<24x24xf32, #tpu.memory_space<vmem>>, %arg10: memref<1x128xf32, #tpu.memory_space<vmem>>) attributes {dimension_semantics = [#tpu.dimension_semantics<arbitrary>], iteration_bounds = array<i64: 1>, scalar_prefetch = 0 : i64, scratch_operands = 0 : i64, tpu.core_type = #tpu.core_type<tc>, window_params = [{pipeline_mode = #tpu.pipeline_mode<synchronous>, transform_indices = @transform_0, window_bounds = array<i64: 32, 512>}, {pipeline_mode = #tpu.pipeline_mode<synchronous>, transform_indices = @transform_1, window_bounds = array<i64: 256, 32>}, {pipeline_mode = #tpu.pipeline_mode<synchronous>, transform_indices = @transform_2, window_bounds = array<i64: 32, 256>}, {pipeline_mode = #tpu.pipeline_mode<synchronous>, transform_indices = @transform_3, window_bounds = array<i64: 1, 32>}, {pipeline_mode = #tpu.pipeline_mode<synchronous>, transform_indices = @transform_4, window_bounds = array<i64: 1, 32>}, {pipeline_mode = #tpu.pipeline_mode<synchronous>, transform_indices = @transform_5, window_bounds = array<i64: 1, 32>}, {pipeline_mode = #tpu.pipeline_mode<synchronous>, transform_indices = @transform_6, window_bounds = array<i64: 32, 128>}, {pipeline_mode = #tpu.pipeline_mode<synchronous>, transform_indices = @transform_7, window_bounds = array<i64: 1, 128>}, {pipeline_mode = #tpu.pipeline_mode<synchronous>, transform_indices = @transform_8, window_bounds = array<i64: 24, 24>}, {pipeline_mode = #tpu.pipeline_mode<synchronous>, transform_indices = @transform_9, window_bounds = array<i64: 1, 128>}]} {
    %c0 = arith.constant 0 : index
    %c0_0 = arith.constant 0 : index
    %0 = vector.load %arg1[%c0, %c0_0] : memref<32x512xf32, #tpu.memory_space<vmem>>, vector<32x512xf32>
    %c0_1 = arith.constant 0 : index
    %c0_2 = arith.constant 0 : index
    %1 = vector.load %arg2[%c0_1, %c0_2] : memref<256x32xf32, #tpu.memory_space<vmem>>, vector<256x32xf32>
    %c0_3 = arith.constant 0 : index
    %c0_4 = arith.constant 0 : index
    %2 = vector.load %arg4[%c0_3, %c0_4] : memref<1x32xf32, #tpu.memory_space<vmem>>, vector<1x32xf32>
    %cst = arith.constant dense<0.000000e+00> : vector<1x512xf32>
    %3 = tpu.matmul %2, %0, %cst {dimension_numbers = #tpu.dot_dimension_numbers<[1], [0], [0], [1], [0, 0, 1, 1], [], []>} : vector<1x32xf32>, vector<32x512xf32>, vector<1x512xf32> -> vector<1x512xf32>
    %4 = tpu.iota {dimensions = array<i32: 1>} : vector<1x512xi32>
    %c392_i32 = arith.constant 392 : i32
    %5 = vector.broadcast %c392_i32 : i32 to vector<1x512xi32>
    %6 = arith.cmpi slt, %4, %5 : vector<1x512xi32>
    %cst_5 = arith.constant -1.000000e+30 : f32
    %7 = vector.broadcast %cst_5 : f32 to vector<1x512xf32>
    %8 = arith.select %6, %3, %7 : vector<1x512xi1>, vector<1x512xf32>
    %cst_6 = arith.constant dense<0xFF800000> : vector<1xf32>
    %9 = vector.multi_reduction <maximumf>, %8, %cst_6 [1] : vector<1x512xf32> to vector<1xf32>
    %10 = vector.shape_cast %9 : vector<1xf32> to vector<1x1xf32>
    %11 = vector.broadcast %10 : vector<1x1xf32> to vector<1x512xf32>
    %12 = arith.subf %3, %11 : vector<1x512xf32>
    %13 = math.exp %12 : vector<1x512xf32>
    %cst_7 = arith.constant 0.000000e+00 : f32
    %14 = vector.broadcast %cst_7 : f32 to vector<1x512xf32>
    %15 = arith.select %6, %13, %14 : vector<1x512xi1>, vector<1x512xf32>
    %cst_8 = arith.constant dense<0.000000e+00> : vector<1xf32>
    %16 = vector.multi_reduction <add>, %15, %cst_8 [1] : vector<1x512xf32> to vector<1xf32>
    %17 = vector.shape_cast %16 : vector<1xf32> to vector<1x1xf32>
    %18 = tpu.reciprocal %17 {approx = true} : vector<1x1xf32> -> vector<1x1xf32>
    %19 = tpu.iota {dimensions = array<i32: 1>} : vector<1x256xi32>
    %c196_i32 = arith.constant 196 : i32
    %20 = vector.broadcast %c196_i32 : i32 to vector<1x256xi32>
    %21 = arith.cmpi slt, %19, %20 : vector<1x256xi32>
    %22 = vector.extract_strided_slice %15 {offsets = [0, 0], sizes = [1, 256], strides = [1, 1]} : vector<1x512xf32> to vector<1x256xf32>
    %23 = vector.broadcast %18 : vector<1x1xf32> to vector<1x256xf32>
    %24 = arith.mulf %22, %23 : vector<1x256xf32>
    %cst_9 = arith.constant 0.000000e+00 : f32
    %25 = vector.broadcast %cst_9 : f32 to vector<1x256xf32>
    %26 = arith.select %21, %24, %25 : vector<1x256xi1>, vector<1x256xf32>
    %cst_10 = arith.constant dense<0.000000e+00> : vector<1xf32>
    %27 = vector.multi_reduction <add>, %26, %cst_10 [1] : vector<1x256xf32> to vector<1xf32>
    %28 = vector.shape_cast %27 : vector<1xf32> to vector<1x1xf32>
    %cst_11 = arith.constant 9.99999997E-7 : f32
    %29 = vector.broadcast %cst_11 : f32 to vector<1x1xf32>
    %30 = arith.addf %28, %29 : vector<1x1xf32>
    %31 = tpu.reciprocal %30 {approx = true} : vector<1x1xf32> -> vector<1x1xf32>
    %32 = vector.broadcast %31 : vector<1x1xf32> to vector<1x256xf32>
    %33 = arith.mulf %26, %32 : vector<1x256xf32>
    %34 = vector.extract_strided_slice %0 {offsets = [0, 0], sizes = [32, 256], strides = [1, 1]} : vector<32x512xf32> to vector<32x256xf32>
    %c0_12 = arith.constant 0 : index
    %c0_13 = arith.constant 0 : index
    %35 = vector.load %arg3[%c0_12, %c0_13] : memref<32x256xf32, #tpu.memory_space<vmem>>, vector<32x256xf32>
    %36 = arith.subf %35, %34 : vector<32x256xf32>
    %37 = vector.broadcast %33 : vector<1x256xf32> to vector<32x256xf32>
    %38 = arith.mulf %36, %37 : vector<32x256xf32>
    %39 = arith.mulf %38, %38 : vector<32x256xf32>
    %cst_14 = arith.constant dense<0.000000e+00> : vector<32xf32>
    %40 = vector.multi_reduction <add>, %39, %cst_14 [1] : vector<32x256xf32> to vector<32xf32>
    %41 = vector.shape_cast %40 : vector<32xf32> to vector<32x1xf32>
    %cst_15 = arith.constant dense<0.000000e+00> : vector<1xf32>
    %42 = vector.multi_reduction <add>, %41, %cst_15 [0] : vector<32x1xf32> to vector<1xf32>
    %43 = vector.shape_cast %42 : vector<1xf32> to vector<1x1xf32>
    %44 = math.sqrt %43 : vector<1x1xf32>
    %cst_16 = arith.constant dense<0xFF800000> : vector<1xf32>
    %45 = vector.multi_reduction <maximumf>, %33, %cst_16 [1] : vector<1x256xf32> to vector<1xf32>
    %46 = vector.shape_cast %45 : vector<1xf32> to vector<1x1xf32>
    %47 = vector.broadcast %46 : vector<1x1xf32> to vector<1x256xf32>
    %48 = arith.subf %33, %47 : vector<1x256xf32>
    %49 = math.exp %48 : vector<1x256xf32>
    %cst_17 = arith.constant 0.000000e+00 : f32
    %50 = vector.broadcast %cst_17 : f32 to vector<1x256xf32>
    %51 = arith.select %21, %49, %50 : vector<1x256xi1>, vector<1x256xf32>
    %cst_18 = arith.constant dense<0.000000e+00> : vector<1xf32>
    %52 = vector.multi_reduction <add>, %51, %cst_18 [1] : vector<1x256xf32> to vector<1xf32>
    %53 = vector.shape_cast %52 : vector<1xf32> to vector<1x1xf32>
    %54 = vector.extract_strided_slice %51 {offsets = [0, 0], sizes = [1, 1], strides = [1, 1]} : vector<1x256xf32> to vector<1x1xf32>
    %55 = tpu.reciprocal %53 {approx = true} : vector<1x1xf32> -> vector<1x1xf32>
    %56 = arith.mulf %54, %55 : vector<1x1xf32>
    %57 = vector.extract_strided_slice %33 {offsets = [0, 0], sizes = [1, 1], strides = [1, 1]} : vector<1x256xf32> to vector<1x1xf32>
    %58 = arith.subf %57, %46 : vector<1x1xf32>
    %59 = math.log %53 : vector<1x1xf32>
    %60 = arith.subf %58, %59 : vector<1x1xf32>
    %61 = arith.mulf %56, %60 : vector<1x1xf32>
    %62 = vector.extract_strided_slice %3 {offsets = [0, 0], sizes = [1, 256], strides = [1, 1]} : vector<1x512xf32> to vector<1x256xf32>
    %cst_19 = arith.constant -1.000000e+30 : f32
    %63 = vector.broadcast %cst_19 : f32 to vector<1x256xf32>
    %64 = arith.select %21, %62, %63 : vector<1x256xi1>, vector<1x256xf32>
    %65 = tpu.iota {dimensions = array<i32: 0>} : vector<256x1xi32>
    %c196_i32_20 = arith.constant 196 : i32
    %66 = vector.broadcast %c196_i32_20 : i32 to vector<256x1xi32>
    %67 = arith.cmpi slt, %65, %66 : vector<256x1xi32>
    %68 = vector.broadcast %2 : vector<1x32xf32> to vector<256x32xf32>
    %69 = arith.mulf %1, %68 : vector<256x32xf32>
    %cst_21 = arith.constant dense<0.000000e+00> : vector<256xf32>
    %70 = vector.multi_reduction <add>, %69, %cst_21 [1] : vector<256x32xf32> to vector<256xf32>
    %71 = vector.shape_cast %70 : vector<256xf32> to vector<256x1xf32>
    %cst_22 = arith.constant -1.000000e+30 : f32
    %72 = vector.broadcast %cst_22 : f32 to vector<256x1xf32>
    %73 = arith.select %67, %71, %72 : vector<256x1xi1>, vector<256x1xf32>
    %74 = tpu.iota {dimensions = array<i32: 0>} : vector<256x256xi32>
    %75 = tpu.iota {dimensions = array<i32: 1>} : vector<256x256xi32>
    %76 = vector.broadcast %73 : vector<256x1xf32> to vector<256x256xf32>
    %77 = vector.broadcast %64 : vector<1x256xf32> to vector<256x256xf32>
    %78 = arith.cmpf ogt, %76, %77 : vector<256x256xf32>
    %79 = vector.broadcast %73 : vector<256x1xf32> to vector<256x256xf32>
    %80 = vector.broadcast %64 : vector<1x256xf32> to vector<256x256xf32>
    %81 = arith.cmpf oeq, %79, %80 : vector<256x256xf32>
    %82 = arith.cmpi slt, %74, %75 : vector<256x256xi32>
    %83 = arith.andi %81, %82 : vector<256x256xi1>
    %84 = arith.cmpi ne, %74, %75 : vector<256x256xi32>
    %85 = arith.andi %78, %84 : vector<256x256xi1>
    %86 = arith.ori %85, %83 : vector<256x256xi1>
    %cst_23 = arith.constant 1.000000e+00 : f32
    %cst_24 = arith.constant 0.000000e+00 : f32
    %87 = vector.broadcast %cst_23 : f32 to vector<256x256xf32>
    %88 = vector.broadcast %cst_24 : f32 to vector<256x256xf32>
    %89 = arith.select %86, %87, %88 : vector<256x256xi1>, vector<256x256xf32>
    %cst_25 = arith.constant dense<0.000000e+00> : vector<256xf32>
    %90 = vector.multi_reduction <add>, %89, %cst_25 [0] : vector<256x256xf32> to vector<256xf32>
    %91 = vector.shape_cast %90 : vector<256xf32> to vector<1x256xf32>
    %92 = arith.fptosi %91 : vector<1x256xf32> to vector<1x256xi32>
    %93 = tpu.iota {dimensions = array<i32: 0>} : vector<24x256xi32>
    %c1_i32 = arith.constant 1 : i32
    %94 = vector.broadcast %c1_i32 : i32 to vector<24x256xi32>
    %95 = arith.cmpi sge, %93, %94 : vector<24x256xi32>
    %c19_i32 = arith.constant 19 : i32
    %96 = vector.broadcast %c19_i32 : i32 to vector<24x256xi32>
    %97 = arith.cmpi sle, %93, %96 : vector<24x256xi32>
    %98 = arith.andi %95, %97 : vector<24x256xi1>
    %c1_i32_26 = arith.constant 1 : i32
    %99 = vector.broadcast %c1_i32_26 : i32 to vector<24x256xi32>
    %100 = arith.subi %93, %99 : vector<24x256xi32>
    %101 = vector.broadcast %92 : vector<1x256xi32> to vector<24x256xi32>
    %102 = arith.cmpi eq, %100, %101 : vector<24x256xi32>
    %103 = arith.andi %98, %102 : vector<24x256xi1>
    %c0_i32 = arith.constant 0 : i32
    %104 = vector.broadcast %c0_i32 : i32 to vector<24x256xi32>
    %105 = arith.cmpi eq, %93, %104 : vector<24x256xi32>
    %cst_27 = arith.constant 1.000000e+00 : f32
    %cst_28 = arith.constant 0.000000e+00 : f32
    %106 = vector.broadcast %cst_27 : f32 to vector<24x256xf32>
    %107 = vector.broadcast %cst_28 : f32 to vector<24x256xf32>
    %108 = arith.select %103, %106, %107 : vector<24x256xi1>, vector<24x256xf32>
    %109 = vector.shape_cast %33 : vector<1x256xf32> to vector<1x256xf32>
    %110 = vector.broadcast %109 : vector<1x256xf32> to vector<24x256xf32>
    %111 = arith.select %105, %110, %108 : vector<24x256xi1>, vector<24x256xf32>
    %cst_29 = arith.constant dense<0.000000e+00> : vector<24x32xf32>
    %112 = tpu.matmul %111, %1, %cst_29 {dimension_numbers = #tpu.dot_dimension_numbers<[1], [0], [0], [1], [0, 0, 1, 1], [], []>} : vector<24x256xf32>, vector<256x32xf32>, vector<24x32xf32> -> vector<24x32xf32>
    %113 = vector.extract_strided_slice %112 {offsets = [0, 0], sizes = [1, 32], strides = [1, 1]} : vector<24x32xf32> to vector<1x32xf32>
    %cst_30 = arith.constant dense<0.000000e+00> : vector<1xf32>
    %114 = vector.multi_reduction <add>, %113, %cst_30 [1] : vector<1x32xf32> to vector<1xf32>
    %115 = vector.shape_cast %114 : vector<1xf32> to vector<1x1xf32>
    %cst_31 = arith.constant 3.200000e+01 : f32
    %116 = vector.broadcast %cst_31 : f32 to vector<1x1xf32>
    %117 = arith.divf %115, %116 : vector<1x1xf32>
    %118 = vector.broadcast %117 : vector<1x1xf32> to vector<1x32xf32>
    %119 = arith.subf %113, %118 : vector<1x32xf32>
    %120 = arith.mulf %119, %119 : vector<1x32xf32>
    %cst_32 = arith.constant dense<0.000000e+00> : vector<1xf32>
    %121 = vector.multi_reduction <add>, %120, %cst_32 [1] : vector<1x32xf32> to vector<1xf32>
    %122 = vector.shape_cast %121 : vector<1xf32> to vector<1x1xf32>
    %cst_33 = arith.constant 3.200000e+01 : f32
    %123 = vector.broadcast %cst_33 : f32 to vector<1x1xf32>
    %124 = arith.divf %122, %123 : vector<1x1xf32>
    %125 = vector.broadcast %117 : vector<1x1xf32> to vector<1x32xf32>
    %126 = arith.subf %113, %125 : vector<1x32xf32>
    %cst_34 = arith.constant 9.99999997E-7 : f32
    %127 = vector.broadcast %cst_34 : f32 to vector<1x1xf32>
    %128 = arith.addf %124, %127 : vector<1x1xf32>
    %129 = math.rsqrt %128 : vector<1x1xf32>
    %130 = vector.broadcast %129 : vector<1x1xf32> to vector<1x32xf32>
    %131 = arith.mulf %126, %130 : vector<1x32xf32>
    %c0_35 = arith.constant 0 : index
    %c0_36 = arith.constant 0 : index
    %132 = vector.load %arg5[%c0_35, %c0_36] : memref<1x32xf32, #tpu.memory_space<vmem>>, vector<1x32xf32>
    %133 = arith.mulf %131, %132 : vector<1x32xf32>
    %c0_37 = arith.constant 0 : index
    %c0_38 = arith.constant 0 : index
    %134 = vector.load %arg6[%c0_37, %c0_38] : memref<1x32xf32, #tpu.memory_space<vmem>>, vector<1x32xf32>
    %135 = arith.addf %133, %134 : vector<1x32xf32>
    %c0_39 = arith.constant 0 : index
    %c0_40 = arith.constant 0 : index
    %136 = vector.load %arg7[%c0_39, %c0_40] : memref<32x128xf32, #tpu.memory_space<vmem>>, vector<32x128xf32>
    %cst_41 = arith.constant dense<0.000000e+00> : vector<1x128xf32>
    %137 = tpu.matmul %135, %136, %cst_41 {dimension_numbers = #tpu.dot_dimension_numbers<[1], [0], [0], [1], [0, 0, 1, 1], [], []>} : vector<1x32xf32>, vector<32x128xf32>, vector<1x128xf32> -> vector<1x128xf32>
    %c0_42 = arith.constant 0 : index
    %c0_43 = arith.constant 0 : index
    %138 = vector.load %arg8[%c0_42, %c0_43] : memref<1x128xf32, #tpu.memory_space<vmem>>, vector<1x128xf32>
    %139 = arith.addf %137, %138 : vector<1x128xf32>
    %140 = arith.mulf %112, %112 : vector<24x32xf32>
    %cst_44 = arith.constant dense<0.000000e+00> : vector<24xf32>
    %141 = vector.multi_reduction <add>, %140, %cst_44 [1] : vector<24x32xf32> to vector<24xf32>
    %142 = vector.shape_cast %141 : vector<24xf32> to vector<24x1xf32>
    %cst_45 = arith.constant 1.000000e-16 : f32
    %143 = vector.broadcast %cst_45 : f32 to vector<24x1xf32>
    %144 = arith.maximumf %142, %143 : vector<24x1xf32>
    %145 = math.rsqrt %144 : vector<24x1xf32>
    %146 = vector.broadcast %145 : vector<24x1xf32> to vector<24x32xf32>
    %147 = arith.mulf %112, %146 : vector<24x32xf32>
    %cst_46 = arith.constant dense<0.000000e+00> : vector<24x24xf32>
    %148 = tpu.matmul %147, %147, %cst_46 {dimension_numbers = #tpu.dot_dimension_numbers<[1], [1], [0], [0], [0, 0, 1, 0], [], []>} : vector<24x32xf32>, vector<24x32xf32>, vector<24x24xf32> -> vector<24x24xf32>
    %c0_47 = arith.constant 0 : index
    %c0_48 = arith.constant 0 : index
    %149 = vector.load %arg9[%c0_47, %c0_48] : memref<24x24xf32, #tpu.memory_space<vmem>>, vector<24x24xf32>
    %150 = arith.mulf %148, %149 : vector<24x24xf32>
    %cst_49 = arith.constant dense<0.000000e+00> : vector<24xf32>
    %151 = vector.multi_reduction <add>, %150, %cst_49 [1] : vector<24x24xf32> to vector<24xf32>
    %152 = vector.shape_cast %151 : vector<24xf32> to vector<24x1xf32>
    %cst_50 = arith.constant dense<0.000000e+00> : vector<1xf32>
    %153 = vector.multi_reduction <add>, %152, %cst_50 [0] : vector<24x1xf32> to vector<1xf32>
    %154 = vector.shape_cast %153 : vector<1xf32> to vector<1x1xf32>
    %cst_51 = arith.constant 0.0526315793 : f32
    %155 = vector.broadcast %cst_51 : f32 to vector<1x1xf32>
    %156 = arith.mulf %154, %155 : vector<1x1xf32>
    %157 = tpu.iota {dimensions = array<i32: 1>} : vector<1x128xi32>
    %c10_i32 = arith.constant 10 : i32
    %158 = vector.broadcast %c10_i32 : i32 to vector<1x128xi32>
    %159 = arith.cmpi eq, %157, %158 : vector<1x128xi32>
    %cst_52 = arith.constant 0.000000e+00 : f32
    %160 = vector.shape_cast %156 : vector<1x1xf32> to vector<1x1xf32>
    %161 = vector.broadcast %160 : vector<1x1xf32> to vector<1x128xf32>
    %162 = vector.broadcast %cst_52 : f32 to vector<1x128xf32>
    %163 = arith.select %159, %161, %162 : vector<1x128xi1>, vector<1x128xf32>
    %164 = arith.addf %139, %163 : vector<1x128xf32>
    %c11_i32 = arith.constant 11 : i32
    %165 = vector.broadcast %c11_i32 : i32 to vector<1x128xi32>
    %166 = arith.cmpi eq, %157, %165 : vector<1x128xi32>
    %cst_53 = arith.constant 0.000000e+00 : f32
    %167 = vector.shape_cast %44 : vector<1x1xf32> to vector<1x1xf32>
    %168 = vector.broadcast %167 : vector<1x1xf32> to vector<1x128xf32>
    %169 = vector.broadcast %cst_53 : f32 to vector<1x128xf32>
    %170 = arith.select %166, %168, %169 : vector<1x128xi1>, vector<1x128xf32>
    %171 = arith.addf %164, %170 : vector<1x128xf32>
    %c12_i32 = arith.constant 12 : i32
    %172 = vector.broadcast %c12_i32 : i32 to vector<1x128xi32>
    %173 = arith.cmpi eq, %157, %172 : vector<1x128xi32>
    %cst_54 = arith.constant 0.000000e+00 : f32
    %174 = vector.shape_cast %61 : vector<1x1xf32> to vector<1x1xf32>
    %175 = vector.broadcast %174 : vector<1x1xf32> to vector<1x128xf32>
    %176 = vector.broadcast %cst_54 : f32 to vector<1x128xf32>
    %177 = arith.select %173, %175, %176 : vector<1x128xi1>, vector<1x128xf32>
    %178 = arith.addf %171, %177 : vector<1x128xf32>
    %c0_55 = arith.constant 0 : index
    %c0_56 = arith.constant 0 : index
    %179 = vector.load %arg10[%c0_55, %c0_56] : memref<1x128xf32, #tpu.memory_space<vmem>>, vector<1x128xf32>
    tpu.vector_store %arg10[%c0_55, %c0_56], %178 {strides = array<i32>} : memref<1x128xf32, #tpu.memory_space<vmem>>, vector<1x128xf32>,
    return
  }
  func.func @transform_0(%arg0: i32) -> (i32, i32) {
    %c0_i32 = arith.constant 0 : i32
    %c0_i32_0 = arith.constant 0 : i32
    %c0_i32_1 = arith.constant 0 : i32
    return %c0_i32, %c0_i32_0 : i32, i32
  }
  func.func @transform_1(%arg0: i32) -> (i32, i32) {
    %c0_i32 = arith.constant 0 : i32
    %c0_i32_0 = arith.constant 0 : i32
    %c0_i32_1 = arith.constant 0 : i32
    return %c0_i32, %c0_i32_0 : i32, i32
  }
  func.func @transform_2(%arg0: i32) -> (i32, i32) {
    %c0_i32 = arith.constant 0 : i32
    %c0_i32_0 = arith.constant 0 : i32
    %c0_i32_1 = arith.constant 0 : i32
    return %c0_i32, %c0_i32_0 : i32, i32
  }
  func.func @transform_3(%arg0: i32) -> (i32, i32) {
    %c0_i32 = arith.constant 0 : i32
    %c0_i32_0 = arith.constant 0 : i32
    %c0_i32_1 = arith.constant 0 : i32
    return %c0_i32, %c0_i32_0 : i32, i32
  }
  func.func @transform_4(%arg0: i32) -> (i32, i32) {
    %c0_i32 = arith.constant 0 : i32
    %c0_i32_0 = arith.constant 0 : i32
    %c0_i32_1 = arith.constant 0 : i32
    return %c0_i32, %c0_i32_0 : i32, i32
  }
  func.func @transform_5(%arg0: i32) -> (i32, i32) {
    %c0_i32 = arith.constant 0 : i32
    %c0_i32_0 = arith.constant 0 : i32
    %c0_i32_1 = arith.constant 0 : i32
    return %c0_i32, %c0_i32_0 : i32, i32
  }
  func.func @transform_6(%arg0: i32) -> (i32, i32) {
    %c0_i32 = arith.constant 0 : i32
    %c0_i32_0 = arith.constant 0 : i32
    %c0_i32_1 = arith.constant 0 : i32
    return %c0_i32, %c0_i32_0 : i32, i32
  }
  func.func @transform_7(%arg0: i32) -> (i32, i32) {
    %c0_i32 = arith.constant 0 : i32
    %c0_i32_0 = arith.constant 0 : i32
    %c0_i32_1 = arith.constant 0 : i32
    return %c0_i32, %c0_i32_0 : i32, i32
  }
  func.func @transform_8(%arg0: i32) -> (i32, i32) {
    %c0_i32 = arith.constant 0 : i32
    %c0_i32_0 = arith.constant 0 : i32
    %c0_i32_1 = arith.constant 0 : i32
    return %c0_i32, %c0_i32_0 : i32, i32
  }
  func.func @transform_9(%arg0: i32) -> (i32, i32) {
    %c0_i32 = arith.constant 0 : i32
    %c0_i32_0 = arith.constant 0 : i32
    %c0_i32_1 = arith.constant 0 : i32
    return %c0_i32, %c0_i32_0 : i32, i32
  }
}

</mosaic_0001>

<llo_original>
// kernel: feature_select_forward.1
$region0: #{feature_select_forward.1}
  #allocation0 [shape = 'u32[]', space=smem, size = 0x4, offset = 0x4, fixed_abs, tag = 'smem constant byte address 0x4 - core index']
  #allocation1 [shape = 'u32[144,128]{1,0:T(1,128)}', space=vmem, size = 0x12000, scoped, tag = 'internal scratch']
  %s0 = inlined_call_operand.vmem [shape: f32[32,512], index: 0, kind: input, shape index: {}]
  %s1 = inlined_call_operand.vmem [shape: f32[256,32], index: 1, kind: input, shape index: {}]
  %s2 = inlined_call_operand.vmem [shape: f32[32,256], index: 2, kind: input, shape index: {}]
  %s3 = inlined_call_operand.vmem [shape: f32[1,32], index: 3, kind: input, shape index: {}]
  %s4 = inlined_call_operand.vmem [shape: f32[1,32], index: 4, kind: input, shape index: {}]
  %s5 = inlined_call_operand.vmem [shape: f32[1,32], index: 5, kind: input, shape index: {}]
  %s6 = inlined_call_operand.vmem [shape: f32[32,128], index: 6, kind: input, shape index: {}]
  %s7 = inlined_call_operand.vmem [shape: f32[1,128], index: 7, kind: input, shape index: {}]
  %s8 = inlined_call_operand.vmem [shape: f32[24,24], index: 8, kind: input, shape index: {}]
  %s9 = inlined_call_operand.vmem [shape: f32[1,128], index: 9, kind: output, shape index: {}]
  %s10 = sld [smem:[#allocation0]]
  $region46: #{feature_select_forward.1} parent=0
    _
  %s12 = ssub.s32 1, %s10
  %s13 = scalar_select 0, %s12, %s10
  // Predicated region
  $region2: #{feature_select_forward.1} parent=0 // pred_check
    _
  $region3: #{feature_select_forward.1} parent=0 // pred_check_branch
    %15 = sbr.rel (0) target = $region5
  $region4: #{feature_select_forward.1} parent=0 // pred_region
    _
  $region5: #{feature_select_forward.1} parent=0 // pred_fallthru
    _
  // Predicated region
  $region6: #{feature_select_forward.1} parent=0 // pred_check
    _
  $region7: #{feature_select_forward.1} parent=0 // pred_check_branch
    %17 = sbr.rel (0) target = $region9
  $region8: #{feature_select_forward.1} parent=0 // pred_region
    _
  $region9: #{feature_select_forward.1} parent=0 // pred_fallthru
    _
  // Predicated region
  $region10: #{feature_select_forward.1} parent=0 // pred_check
    _
  $region11: #{feature_select_forward.1} parent=0 // pred_check_branch
    %19 = sbr.rel (0) target = $region13
  $region12: #{feature_select_forward.1} parent=0 // pred_region
    _
  $region13: #{feature_select_forward.1} parent=0 // pred_fallthru
    _
  // Predicated region
  $region14: #{feature_select_forward.1} parent=0 // pred_check
    _
  $region15: #{feature_select_forward.1} parent=0 // pred_check_branch
    %21 = sbr.rel (0) target = $region17
  $region16: #{feature_select_forward.1} parent=0 // pred_region
    _
  $region17: #{feature_select_forward.1} parent=0 // pred_fallthru
    _
  // Predicated region
  $region18: #{feature_select_forward.1} parent=0 // pred_check
    _
  $region19: #{feature_select_forward.1} parent=0 // pred_check_branch
    %23 = sbr.rel (0) target = $region21
  $region20: #{feature_select_forward.1} parent=0 // pred_region
    _
  $region21: #{feature_select_forward.1} parent=0 // pred_fallthru
    _
  // Predicated region
  $region22: #{feature_select_forward.1} parent=0 // pred_check
    _
  $region23: #{feature_select_forward.1} parent=0 // pred_check_branch
    %25 = sbr.rel (0) target = $region25
  $region24: #{feature_select_forward.1} parent=0 // pred_region
    _
  $region25: #{feature_select_forward.1} parent=0 // pred_fallthru
    _
  // Predicated region
  $region26: #{feature_select_forward.1} parent=0 // pred_check
    _
  $region27: #{feature_select_forward.1} parent=0 // pred_check_branch
    %27 = sbr.rel (0) target = $region29
  $region28: #{feature_select_forward.1} parent=0 // pred_region
    _
  $region29: #{feature_select_forward.1} parent=0 // pred_fallthru
    _
  // Predicated region
  $region30: #{feature_select_forward.1} parent=0 // pred_check
    _
  $region31: #{feature_select_forward.1} parent=0 // pred_check_branch
    %29 = sbr.rel (0) target = $region33
  $region32: #{feature_select_forward.1} parent=0 // pred_region
    _
  $region33: #{feature_select_forward.1} parent=0 // pred_fallthru
    _
  // Predicated region
  $region34: #{feature_select_forward.1} parent=0 // pred_check
    _
  $region35: #{feature_select_forward.1} parent=0 // pred_check_branch
    %31 = sbr.rel (0) target = $region37
  $region36: #{feature_select_forward.1} parent=0 // pred_region
    _
  $region37: #{feature_select_forward.1} parent=0 // pred_fallthru
    _
  %v32 = vld [vmem:[%s0] sm:$0xff]
  %v33 = vld [vmem:[%s0 + $0x8] sm:$0xff]
  %v34 = vld [vmem:[%s0 + $0x10] sm:$0xff]
  %v35 = vld [vmem:[%s0 + $0x18] sm:$0xff]
  %v36 = vld [vmem:[%s0 + $0x20] sm:$0xff]
  %v37 = vld [vmem:[%s0 + $0x28] sm:$0xff]
  %v38 = vld [vmem:[%s0 + $0x30] sm:$0xff]
  %v39 = vld [vmem:[%s0 + $0x38] sm:$0xff]
  %v40 = vld [vmem:[%s0 + $0x40] sm:$0xff]
  %v41 = vld [vmem:[%s0 + $0x48] sm:$0xff]
  %v42 = vld [vmem:[%s0 + $0x50] sm:$0xff]
  %v43 = vld [vmem:[%s0 + $0x58] sm:$0xff]
  %v44 = vld [vmem:[%s0 + $0x60] sm:$0xff]
  %v45 = vld [vmem:[%s0 + $0x68] sm:$0xff]
  %v46 = vld [vmem:[%s0 + $0x70] sm:$0xff]
  %v47 = vld [vmem:[%s0 + $0x78] sm:$0xff]
  %v48 = vld [vmem:[%s1] sm:$0xff]
  %v49 = vld [vmem:[%s1 + $0x8] sm:$0xff]
  %v50 = vld [vmem:[%s1 + $0x10] sm:$0xff]
  %v51 = vld [vmem:[%s1 + $0x18] sm:$0xff]
  %v52 = vld [vmem:[%s1 + $0x20] sm:$0xff]
  %v53 = vld [vmem:[%s1 + $0x28] sm:$0xff]
  %v54 = vld [vmem:[%s1 + $0x30] sm:$0xff]
  %v55 = vld [vmem:[%s1 + $0x38] sm:$0xff]
  %v56 = vld [vmem:[%s1 + $0x40] sm:$0xff]
  %v57 = vld [vmem:[%s1 + $0x48] sm:$0xff]
  %v58 = vld [vmem:[%s1 + $0x50] sm:$0xff]
  %v59 = vld [vmem:[%s1 + $0x58] sm:$0xff]
  %v60 = vld [vmem:[%s1 + $0x60] sm:$0xff]
  %v61 = vld [vmem:[%s1 + $0x68] sm:$0xff]
  %v62 = vld [vmem:[%s1 + $0x70] sm:$0xff]
  %v63 = vld [vmem:[%s1 + $0x78] sm:$0xff]
  %v64 = vld [vmem:[%s1 + $0x80] sm:$0xff]
  %v65 = vld [vmem:[%s1 + $0x88] sm:$0xff]
  %v66 = vld [vmem:[%s1 + $0x90] sm:$0xff]
  %v67 = vld [vmem:[%s1 + $0x98] sm:$0xff]
  %v68 = vld [vmem:[%s1 + $0xa0] sm:$0xff]
  %v69 = vld [vmem:[%s1 + $0xa8] sm:$0xff]
  %v70 = vld [vmem:[%s1 + $0xb0] sm:$0xff]
  %v71 = vld [vmem:[%s1 + $0xb8] sm:$0xff]
  %v72 = vld [vmem:[%s1 + $0xc0] sm:$0xff]
  %v73 = vld [vmem:[%s1 + $0xc8] sm:$0xff]
  %v74 = vld [vmem:[%s1 + $0xd0] sm:$0xff]
  %v75 = vld [vmem:[%s1 + $0xd8] sm:$0xff]
  %v76 = vld [vmem:[%s1 + $0xe0] sm:$0xff]
  %v77 = vld [vmem:[%s1 + $0xe8] sm:$0xff]
  %v78 = vld [vmem:[%s1 + $0xf0] sm:$0xff]
  %v79 = vld [vmem:[%s1 + $0xf8] sm:$0xff]
  %v80 = vld [vmem:[%s3] sm:$0x1]
  %vm81 = vcmask 261120
  %v83 = vsel %vm81, %v80, 0
  %85 = vmatprep.subr.mxu0 %v33
  %86 = vmatpush1.msra.mxu0 %v32
  %87 = vmatprep.subr.mxu0 %v37
  %88 = vmatpush1.msra.mxu0 %v36
  %89 = vmatprep.subr.mxu0 %v41
  %90 = vmatpush1.msra.mxu0 %v40
  %91 = vmatprep.subr.mxu0 %v45
  %92 = vmatpush1.msra.mxu0 %v44
  %93 = vmatprep.subr.mxu0 0.0
  %94 = vmatpush1.msra.mxu0 0.0
  %95 = vmatprep.subr.mxu0 0.0
  %96 = vmatpush1.msra.mxu0 0.0
  %97 = vmatprep.subr.mxu0 0.0
  %98 = vmatpush1.msra.mxu0 0.0
  %99 = vmatprep.subr.mxu0 0.0
  %100 = vmatpush1.msra.mxu0 0.0
  %101 = vmatprep.subr.mxu0 0.0
  %102 = vmatpush1.msra.mxu0 0.0
  %103 = vmatprep.subr.mxu0 0.0
  %104 = vmatpush1.msra.mxu0 0.0
  %105 = vmatprep.subr.mxu0 0.0
  %106 = vmatpush1.msra.mxu0 0.0
  %107 = vmatprep.subr.mxu0 0.0
  %108 = vmatpush1.msra.mxu0 0.0
  %109 = vmatprep.subr.mxu0 0.0
  %110 = vmatpush1.msra.mxu0 0.0
  %111 = vmatprep.subr.mxu0 0.0
  %112 = vmatpush1.msra.mxu0 0.0
  %113 = vmatprep.subr.mxu0 0.0
  %114 = vmatpush1.msra.mxu0 0.0
  %115 = vmatprep.subr.mxu0 0.0
  %116 = vmatpush1.msra.mxu0 0.0
  %117 = vmatprep.subr.mxu0 0.0
  %118 = vmatpush1.msra.mxu0 0.0
  %119 = vmatprep.subr.mxu0 0.0
  %120 = vmatpush1.msra.mxu0 0.0
  %121 = vmatprep.subr.mxu0 0.0
  %122 = vmatpush1.msra.mxu0 0.0
  %123 = vmatprep.subr.mxu0 0.0
  %124 = vmatpush1.msra.mxu0 0.0
  %125 = vmatprep.subr.mxu0 0.0
  %126 = vmatpush1.msra.mxu0 0.0
  %127 = vmatprep.subr.mxu0 0.0
  %128 = vmatpush1.msra.mxu0 0.0
  %129 = vmatprep.subr.mxu0 0.0
  %130 = vmatpush1.msra.mxu0 0.0
  %131 = vmatprep.subr.mxu0 0.0
  %132 = vmatpush1.msra.mxu0 0.0
  %133 = vmatprep.subr.mxu0 0.0
  %134 = vmatpush1.msra.mxu0 0.0
  %135 = vmatprep.subr.mxu0 0.0
  %136 = vmatpush1.msra.mxu0 0.0
  %137 = vmatprep.subr.mxu0 0.0
  %138 = vmatpush1.msra.mxu0 0.0
  %139 = vmatprep.subr.mxu0 0.0
  %140 = vmatpush1.msra.mxu0 0.0
  %141 = vmatprep.subr.mxu0 0.0
  %142 = vmatpush1.msra.mxu0 0.0
  %143 = vmatprep.subr.mxu0 0.0
  %144 = vmatpush1.msra.mxu0 0.0
  %145 = vmatprep.subr.mxu0 0.0
  %146 = vmatpush1.msra.mxu0 0.0
  %147 = vmatprep.subr.mxu0 0.0
  %148 = vmatpush1.msra.mxu0 0.0
  %149 = vmatprep.mubr.f32.mxu0 0.0
  %150 = vmatmul.mubr.f32.gmra.mrb[0].mxu0 %v83
  %v151 = vpop.f32.mrb[0].mxu0
  %v152 = vadd.f32 0.0, %v151
  %v153 = vpop.f32.mrb[0].mxu0
  %v154 = vadd.f32 0.0, %v153
  %155 = vdwg.mxu0
  %156 = vmatprep.subr.mxu0 %v35
  %157 = vmatpush1.msra.mxu0 %v34
  %158 = vmatprep.subr.mxu0 %v39
  %159 = vmatpush1.msra.mxu0 %v38
  %160 = vmatprep.subr.mxu0 %v43
  %161 = vmatpush1.msra.mxu0 %v42
  %162 = vmatprep.subr.mxu0 %v47
  %163 = vmatpush1.msra.mxu0 %v46
  %164 = vmatprep.subr.mxu0 0.0
  %165 = vmatpush1.msra.mxu0 0.0
  %166 = vmatprep.subr.mxu0 0.0
  %167 = vmatpush1.msra.mxu0 0.0
  %168 = vmatprep.subr.mxu0 0.0
  %169 = vmatpush1.msra.mxu0 0.0
  %170 = vmatprep.subr.mxu0 0.0
  %171 = vmatpush1.msra.mxu0 0.0
  %172 = vmatprep.subr.mxu0 0.0
  %173 = vmatpush1.msra.mxu0 0.0
  %174 = vmatprep.subr.mxu0 0.0
  %175 = vmatpush1.msra.mxu0 0.0
  %176 = vmatprep.subr.mxu0 0.0
  %177 = vmatpush1.msra.mxu0 0.0
  %178 = vmatprep.subr.mxu0 0.0
  %179 = vmatpush1.msra.mxu0 0.0
  %180 = vmatprep.subr.mxu0 0.0
  %181 = vmatpush1.msra.mxu0 0.0
  %182 = vmatprep.subr.mxu0 0.0
  %183 = vmatpush1.msra.mxu0 0.0
  %184 = vmatprep.subr.mxu0 0.0
  %185 = vmatpush1.msra.mxu0 0.0
  %186 = vmatprep.subr.mxu0 0.0
  %187 = vmatpush1.msra.mxu0 0.0
  %188 = vmatprep.subr.mxu0 0.0
  %189 = vmatpush1.msra.mxu0 0.0
  %190 = vmatprep.subr.mxu0 0.0
  %191 = vmatpush1.msra.mxu0 0.0
  %192 = vmatprep.subr.mxu0 0.0
  %193 = vmatpush1.msra.mxu0 0.0
  %194 = vmatprep.subr.mxu0 0.0
  %195 = vmatpush1.msra.mxu0 0.0
  %196 = vmatprep.subr.mxu0 0.0
  %197 = vmatpush1.msra.mxu0 0.0
  %198 = vmatprep.subr.mxu0 0.0
  %199 = vmatpush1.msra.mxu0 0.0
  %200 = vmatprep.subr.mxu0 0.0
  %201 = vmatpush1.msra.mxu0 0.0
  %202 = vmatprep.subr.mxu0 0.0
  %203 = vmatpush1.msra.mxu0 0.0
  %204 = vmatprep.subr.mxu0 0.0
  %205 = vmatpush1.msra.mxu0 0.0
  %206 = vmatprep.subr.mxu0 0.0
  %207 = vmatpush1.msra.mxu0 0.0
  %208 = vmatprep.subr.mxu0 0.0
  %209 = vmatpush1.msra.mxu0 0.0
  %210 = vmatprep.subr.mxu0 0.0
  %211 = vmatpush1.msra.mxu0 0.0
  %212 = vmatprep.subr.mxu0 0.0
  %213 = vmatpush1.msra.mxu0 0.0
  %214 = vmatprep.subr.mxu0 0.0
  %215 = vmatpush1.msra.mxu0 0.0
  %216 = vmatprep.subr.mxu0 0.0
  %217 = vmatpush1.msra.mxu0 0.0
  %218 = vmatprep.subr.mxu0 0.0
  %219 = vmatpush1.msra.mxu0 0.0
  %220 = vmatprep.mubr.f32.mxu0 0.0
  %221 = vmatmul.mubr.f32.gmra.mrb[0].mxu0 %v83
  %v222 = vpop.f32.mrb[0].mxu0
  %v223 = vadd.f32 0.0, %v222
  %v224 = vpop.f32.mrb[0].mxu0
  %v225 = vadd.f32 0.0, %v224
  %226 = vdwg.mxu0
  %v227 = vlaneseq
  %v228 = vand.u32 %v227, 127
  %v229 = vadd.s32 %v228, 128
  %v230 = vadd.s32 %v228, 256
  %v231 = vadd.s32 %v228, 384
  %vm232 = vcmp.lt.s32.totalorder %v228, 392
  %vm233 = vcmp.lt.s32.totalorder %v229, 392
  %vm234 = vcmp.lt.s32.totalorder %v230, 392
  %vm235 = vcmp.lt.s32.totalorder %v231, 392
  %v236 = vsel %vm232, %v152, -1e+30
  %v237 = vsel %vm233, %v154, -1e+30
  %v238 = vsel %vm234, %v223, -1e+30
  %v239 = vsel %vm235, %v225, -1e+30
  %vm240 = vcmask 1040384
  %v241 = vsel %vm240, %v236, -inf
  %v242 = vsel %vm240, %v237, -inf
  %v243 = vsel %vm240, %v238, -inf
  %v244 = vsel %vm240, %v239, -inf
  %v245 = vmax.f32 %v241, %v242
  %v246 = vmax.f32 %v243, %v244
  %v247 = vmax.f32 %v245, %v246
  %248 = vmax.xlane.f32.xlu0 %v247
  %v249 = vpop.xlane.xlu0 %248
  %v250 = vsub.f32 %v152, %v249
  %v251 = vsub.f32 %v154, %v249
  %v252 = vsub.f32 %v223, %v249
  %v253 = vsub.f32 %v225, %v249
  %v254 = vmul.f32 %v250, 1.442695
  %v255 = vpow.pop %v254
  %v256 = vmul.f32 %v251, 1.442695
  %v257 = vpow.pop %v256
  %v258 = vmul.f32 %v252, 1.442695
  %v259 = vpow.pop %v258
  %v260 = vmul.f32 %v253, 1.442695
  %v261 = vpow.pop %v260
  %v262 = vsel %vm232, %v255, 0.0
  %v263 = vsel %vm233, %v257, 0.0
  %v264 = vsel %vm234, %v259, 0.0
  %v265 = vsel %vm235, %v261, 0.0
  %v266 = vsel %vm240, %v262, 0.0
  %v267 = vsel %vm240, %v263, 0.0
  %v268 = vadd.f32 %v266, %v267
  %v269 = vsel %vm240, %v264, 0.0
  %v270 = vadd.f32 %v268, %v269
  %v271 = vsel %vm240, %v265, 0.0
  %v272 = vadd.f32 %v270, %v271
  %273 = vadd.xlane.f32.xlu0 %v272
  %v274 = vpop.xlane.xlu0 %273
  %v275 = vrcp.pop %v274
  %vm276 = vcmp.lt.s32.totalorder %v228, 196
  %vm277 = vcmp.lt.s32.totalorder %v229, 196
  %v278 = vmul.f32 %v262, %v275
  %v279 = vmul.f32 %v263, %v275
  %v280 = vsel %vm276, %v278, 0.0
  %v281 = vsel %vm277, %v279, 0.0
  %v282 = vsel %vm240, %v280, 0.0
  %v283 = vsel %vm240, %v281, 0.0
  %v284 = vadd.f32 %v282, %v283
  %285 = vadd.xlane.f32.xlu0 %v284
  %v286 = vpop.xlane.xlu0 %285
  %v287 = vadd.f32 %v286, 1e-06
  %v288 = vrcp.pop %v287
  %v289 = vmul.f32 %v280, %v288
  %v290 = vmul.f32 %v281, %v288
  %v291 = vld [vmem:[%s2] sm:$0xff]
  %v292 = vld [vmem:[%s2 + $0x8] sm:$0xff]
  %v293 = vld [vmem:[%s2 + $0x10] sm:$0xff]
  %v294 = vld [vmem:[%s2 + $0x18] sm:$0xff]
  %v295 = vld [vmem:[%s2 + $0x20] sm:$0xff]
  %v296 = vld [vmem:[%s2 + $0x28] sm:$0xff]
  %v297 = vld [vmem:[%s2 + $0x30] sm:$0xff]
  %v298 = vld [vmem:[%s2 + $0x38] sm:$0xff]
  %v299 = vsub.f32 %v291, %v32
  %v300 = vsub.f32 %v292, %v33
  %v301 = vsub.f32 %v293, %v36
  %v302 = vsub.f32 %v294, %v37
  %v303 = vsub.f32 %v295, %v40
  %v304 = vsub.f32 %v296, %v41
  %v305 = vsub.f32 %v297, %v44
  %v306 = vsub.f32 %v298, %v45
  %v307 = vlaneseq
  %v308 = vshrl.u32 %v307, 7
  %v309 = vsub.s32 0, %v308
  %v310 = vrot.slane %v289, %v309
  %v311 = vlaneseq
  %v312 = vshrl.u32 %v311, 7
  %v313 = vsub.s32 0, %v312
  %v314 = vrot.slane %v290, %v313
  %v315 = vmul.f32 %v299, %v310
  %v316 = vmul.f32 %v300, %v314
  %v317 = vmul.f32 %v301, %v310
  %v318 = vmul.f32 %v302, %v314
  %v319 = vmul.f32 %v303, %v310
  %v320 = vmul.f32 %v304, %v314
  %v321 = vmul.f32 %v305, %v310
  %v322 = vmul.f32 %v306, %v314
  %v323 = vmul.f32 %v315, %v315
  %v324 = vmul.f32 %v316, %v316
  %v325 = vmul.f32 %v317, %v317
  %v326 = vmul.f32 %v318, %v318
  %v327 = vmul.f32 %v319, %v319
  %v328 = vmul.f32 %v320, %v320
  %v329 = vmul.f32 %v321, %v321
  %v330 = vmul.f32 %v322, %v322
  %v331 = vadd.f32 %v323, %v324
  %332 = vadd.xlane.f32.xlu0 %v331
  %v333 = vpop.xlane.xlu0 %332
  %v334 = vadd.f32 %v325, %v326
  %335 = vadd.xlane.f32.xlu0 %v334
  %v336 = vpop.xlane.xlu0 %335
  %v337 = vadd.f32 %v327, %v328
  %338 = vadd.xlane.f32.xlu0 %v337
  %v339 = vpop.xlane.xlu0 %338
  %v340 = vadd.f32 %v329, %v330
  %341 = vadd.xlane.f32.xlu0 %v340
  %v342 = vpop.xlane.xlu0 %341
  %v343 = vadd.f32 %v333, %v336
  %v344 = vadd.f32 %v343, %v339
  %v345 = vadd.f32 %v344, %v342
  %v346 = vrot.slane %v345, 4
  %v347 = vadd.f32 %v345, %v346
  %v348 = vrot.slane %v347, 2
  %v349 = vadd.f32 %v347, %v348
  %v350 = vrot.slane %v349, 1
  %v351 = vadd.f32 %v349, %v350
  %v352 = vrsqrt.pop %v351
  %v353 = vmul.f32 %v351, %v352
  %vm354 = vcmp.eq.f32.partialorder %v351, inf
  %v355 = vsel %vm354, %v351, %v353
  %vm356 = vcmp.eq.f32.partialorder %v351, 0.0
  %v357 = vand.u32 %v351, 2147483648
  %v358 = vsel %vm356, %v357, %v355
  %v359 = vsel %vm240, %v289, -inf
  %v360 = vsel %vm240, %v290, -inf
  %v361 = vmax.f32 %v359, %v360
  %362 = vmax.xlane.f32.xlu0 %v361
  %v363 = vpop.xlane.xlu0 %362
  %v364 = vsub.f32 %v289, %v363
  %v365 = vsub.f32 %v290, %v363
  %v366 = vmul.f32 %v364, 1.442695
  %v367 = vpow.pop %v366
  %v368 = vmul.f32 %v365, 1.442695
  %v369 = vpow.pop %v368
  %v370 = vsel %vm276, %v367, 0.0
  %v371 = vsel %vm277, %v369, 0.0
  %v372 = vsel %vm240, %v370, 0.0
  %v373 = vsel %vm240, %v371, 0.0
  %v374 = vadd.f32 %v372, %v373
  %375 = vadd.xlane.f32.xlu0 %v374
  %v376 = vpop.xlane.xlu0 %375
  %v377 = vrcp.pop %v376
  %v378 = vmul.f32 %v370, %v377
  %v379 = vlog2.pop %v376
  %v380 = vmul.f32 %v379, 0.6931472
  %v381 = vsub.f32 %v364, %v380
  %v382 = vmul.f32 %v378, %v381
  %v383 = vsel %vm276, %v152, -1e+30
  %v384 = vsel %vm277, %v154, -1e+30
  %v385 = vlaneseq
  %v386 = vshrl.u32 %v385, 7
  %v387 = vadd.s32 %v386, 8
  %v388 = vadd.s32 %v386, 16
  %v389 = vadd.s32 %v386, 24
  %v390 = vadd.s32 %v386, 32
  %v391 = vadd.s32 %v386, 40
  %v392 = vadd.s32 %v386, 48
  %v393 = vadd.s32 %v386, 56
  %v394 = vadd.s32 %v386, 64
  %v395 = vadd.s32 %v386, 72
  %v396 = vadd.s32 %v386, 80
  %v397 = vadd.s32 %v386, 88
  %v398 = vadd.s32 %v386, 96
  %v399 = vadd.s32 %v386, 104
  %v400 = vadd.s32 %v386, 112
  %v401 = vadd.s32 %v386, 120
  %v402 = vadd.s32 %v386, 128
  %v403 = vadd.s32 %v386, 136
  %v404 = vadd.s32 %v386, 144
  %v405 = vadd.s32 %v386, 152
  %v406 = vadd.s32 %v386, 160
  %v407 = vadd.s32 %v386, 168
  %v408 = vadd.s32 %v386, 176
  %v409 = vadd.s32 %v386, 184
  %v410 = vadd.s32 %v386, 192
  %v411 = vadd.s32 %v386, 200
  %v412 = vadd.s32 %v386, 208
  %v413 = vadd.s32 %v386, 216
  %v414 = vadd.s32 %v386, 224
  %v415 = vadd.s32 %v386, 232
  %v416 = vadd.s32 %v386, 240
  %v417 = vadd.s32 %v386, 248
  %vm418 = vcmp.lt.s32.totalorder %v386, 196
  %vm419 = vcmp.lt.s32.totalorder %v387, 196
  %vm420 = vcmp.lt.s32.totalorder %v388, 196
  %vm421 = vcmp.lt.s32.totalorder %v389, 196
  %vm422 = vcmp.lt.s32.totalorder %v390, 196
  %vm423 = vcmp.lt.s32.totalorder %v391, 196
  %vm424 = vcmp.lt.s32.totalorder %v392, 196
  %vm425 = vcmp.lt.s32.totalorder %v393, 196
  %vm426 = vcmp.lt.s32.totalorder %v394, 196
  %vm427 = vcmp.lt.s32.totalorder %v395, 196
  %vm428 = vcmp.lt.s32.totalorder %v396, 196
  %vm429 = vcmp.lt.s32.totalorder %v397, 196
  %vm430 = vcmp.lt.s32.totalorder %v398, 196
  %vm431 = vcmp.lt.s32.totalorder %v399, 196
  %vm432 = vcmp.lt.s32.totalorder %v400, 196
  %vm433 = vcmp.lt.s32.totalorder %v401, 196
  %vm434 = vcmp.lt.s32.totalorder %v402, 196
  %vm435 = vcmp.lt.s32.totalorder %v403, 196
  %vm436 = vcmp.lt.s32.totalorder %v404, 196
  %vm437 = vcmp.lt.s32.totalorder %v405, 196
  %vm438 = vcmp.lt.s32.totalorder %v406, 196
  %vm439 = vcmp.lt.s32.totalorder %v407, 196
  %vm440 = vcmp.lt.s32.totalorder %v408, 196
  %vm441 = vcmp.lt.s32.totalorder %v409, 196
  %vm442 = vcmp.lt.s32.totalorder %v410, 196
  %vm443 = vcmp.lt.s32.totalorder %v411, 196
  %vm444 = vcmp.lt.s32.totalorder %v412, 196
  %vm445 = vcmp.lt.s32.totalorder %v413, 196
  %vm446 = vcmp.lt.s32.totalorder %v414, 196
  %vm447 = vcmp.lt.s32.totalorder %v415, 196
  %vm448 = vcmp.lt.s32.totalorder %v416, 196
  %vm449 = vcmp.lt.s32.totalorder %v417, 196
  %v450 = vlaneseq
  %v451 = vshrl.u32 %v450, 7
  %v452 = vsub.s32 0, %v451
  %v453 = vrot.slane %v80, %v452
  %v455 = vmul.f32 %v48, %v453
  %v456 = vmul.f32 %v49, %v453
  %v457 = vmul.f32 %v50, %v453
  %v458 = vmul.f32 %v51, %v453
  %v459 = vmul.f32 %v52, %v453
  %v460 = vmul.f32 %v53, %v453
  %v461 = vmul.f32 %v54, %v453
  %v462 = vmul.f32 %v55, %v453
  %v463 = vmul.f32 %v56, %v453
  %v464 = vmul.f32 %v57, %v453
  %v465 = vmul.f32 %v58, %v453
  %v466 = vmul.f32 %v59, %v453
  %v467 = vmul.f32 %v60, %v453
  %v468 = vmul.f32 %v61, %v453
  %v469 = vmul.f32 %v62, %v453
  %v470 = vmul.f32 %v63, %v453
  %v471 = vmul.f32 %v64, %v453
  %v472 = vmul.f32 %v65, %v453
  %v473 = vmul.f32 %v66, %v453
  %v474 = vmul.f32 %v67, %v453
  %v475 = vmul.f32 %v68, %v453
  %v476 = vmul.f32 %v69, %v453
  %v477 = vmul.f32 %v70, %v453
  %v478 = vmul.f32 %v71, %v453
  %v479 = vmul.f32 %v72, %v453
  %v480 = vmul.f32 %v73, %v453
  %v481 = vmul.f32 %v74, %v453
  %v482 = vmul.f32 %v75, %v453
  %v483 = vmul.f32 %v76, %v453
  %v484 = vmul.f32 %v77, %v453
  %v485 = vmul.f32 %v78, %v453
  %v486 = vmul.f32 %v79, %v453
  %v487 = vsel %vm81, %v455, 0.0
  %488 = vadd.xlane.f32.xlu0 %v487
  %v489 = vpop.xlane.xlu0 %488
  %v490 = vsel %vm81, %v456, 0.0
  %491 = vadd.xlane.f32.xlu0 %v490
  %v492 = vpop.xlane.xlu0 %491
  %v493 = vsel %vm81, %v457, 0.0
  %494 = vadd.xlane.f32.xlu0 %v493
  %v495 = vpop.xlane.xlu0 %494
  %v496 = vsel %vm81, %v458, 0.0
  %497 = vadd.xlane.f32.xlu0 %v496
  %v498 = vpop.xlane.xlu0 %497
  %v499 = vsel %vm81, %v459, 0.0
  %500 = vadd.xlane.f32.xlu0 %v499
  %v501 = vpop.xlane.xlu0 %500
  %v502 = vsel %vm81, %v460, 0.0
  %503 = vadd.xlane.f32.xlu0 %v502
  %v504 = vpop.xlane.xlu0 %503
  %v505 = vsel %vm81, %v461, 0.0
  %506 = vadd.xlane.f32.xlu0 %v505
  %v507 = vpop.xlane.xlu0 %506
  %v508 = vsel %vm81, %v462, 0.0
  %509 = vadd.xlane.f32.xlu0 %v508
  %v510 = vpop.xlane.xlu0 %509
  %v511 = vsel %vm81, %v463, 0.0
  %512 = vadd.xlane.f32.xlu0 %v511
  %v513 = vpop.xlane.xlu0 %512
  %v514 = vsel %vm81, %v464, 0.0
  %515 = vadd.xlane.f32.xlu0 %v514
  %v516 = vpop.xlane.xlu0 %515
  %v517 = vsel %vm81, %v465, 0.0
  %518 = vadd.xlane.f32.xlu0 %v517
  %v519 = vpop.xlane.xlu0 %518
  %v520 = vsel %vm81, %v466, 0.0
  %521 = vadd.xlane.f32.xlu0 %v520
  %v522 = vpop.xlane.xlu0 %521
  %v523 = vsel %vm81, %v467, 0.0
  %524 = vadd.xlane.f32.xlu0 %v523
  %v525 = vpop.xlane.xlu0 %524
  %v526 = vsel %vm81, %v468, 0.0
  %527 = vadd.xlane.f32.xlu0 %v526
  %v528 = vpop.xlane.xlu0 %527
  %v529 = vsel %vm81, %v469, 0.0
  %530 = vadd.xlane.f32.xlu0 %v529
  %v531 = vpop.xlane.xlu0 %530
  %v532 = vsel %vm81, %v470, 0.0
  %533 = vadd.xlane.f32.xlu0 %v532
  %v534 = vpop.xlane.xlu0 %533
  %v535 = vsel %vm81, %v471, 0.0
  %536 = vadd.xlane.f32.xlu0 %v535
  %v537 = vpop.xlane.xlu0 %536
  %v538 = vsel %vm81, %v472, 0.0
  %539 = vadd.xlane.f32.xlu0 %v538
  %v540 = vpop.xlane.xlu0 %539
  %v541 = vsel %vm81, %v473, 0.0
  %542 = vadd.xlane.f32.xlu0 %v541
  %v543 = vpop.xlane.xlu0 %542
  %v544 = vsel %vm81, %v474, 0.0
  %545 = vadd.xlane.f32.xlu0 %v544
  %v546 = vpop.xlane.xlu0 %545
  %v547 = vsel %vm81, %v475, 0.0
  %548 = vadd.xlane.f32.xlu0 %v547
  %v549 = vpop.xlane.xlu0 %548
  %v550 = vsel %vm81, %v476, 0.0
  %551 = vadd.xlane.f32.xlu0 %v550
  %v552 = vpop.xlane.xlu0 %551
  %v553 = vsel %vm81, %v477, 0.0
  %554 = vadd.xlane.f32.xlu0 %v553
  %v555 = vpop.xlane.xlu0 %554
  %v556 = vsel %vm81, %v478, 0.0
  %557 = vadd.xlane.f32.xlu0 %v556
  %v558 = vpop.xlane.xlu0 %557
  %v559 = vsel %vm81, %v479, 0.0
  %560 = vadd.xlane.f32.xlu0 %v559
  %v561 = vpop.xlane.xlu0 %560
  %v562 = vsel %vm81, %v480, 0.0
  %563 = vadd.xlane.f32.xlu0 %v562
  %v564 = vpop.xlane.xlu0 %563
  %v565 = vsel %vm81, %v481, 0.0
  %566 = vadd.xlane.f32.xlu0 %v565
  %v567 = vpop.xlane.xlu0 %566
  %v568 = vsel %vm81, %v482, 0.0
  %569 = vadd.xlane.f32.xlu0 %v568
  %v570 = vpop.xlane.xlu0 %569
  %v571 = vsel %vm81, %v483, 0.0
  %572 = vadd.xlane.f32.xlu0 %v571
  %v573 = vpop.xlane.xlu0 %572
  %v574 = vsel %vm81, %v484, 0.0
  %575 = vadd.xlane.f32.xlu0 %v574
  %v576 = vpop.xlane.xlu0 %575
  %v577 = vsel %vm81, %v485, 0.0
  %578 = vadd.xlane.f32.xlu0 %v577
  %v579 = vpop.xlane.xlu0 %578
  %v580 = vsel %vm81, %v486, 0.0
  %581 = vadd.xlane.f32.xlu0 %v580
  %v582 = vpop.xlane.xlu0 %581
  %v583 = vsel %vm418, %v489, -1e+30
  %v584 = vsel %vm419, %v492, -1e+30
  %v585 = vsel %vm420, %v495, -1e+30
  %v586 = vsel %vm421, %v498, -1e+30
  %v587 = vsel %vm422, %v501, -1e+30
  %v588 = vsel %vm423, %v504, -1e+30
  %v589 = vsel %vm424, %v507, -1e+30
  %v590 = vsel %vm425, %v510, -1e+30
  %v591 = vsel %vm426, %v513, -1e+30
  %v592 = vsel %vm427, %v516, -1e+30
  %v593 = vsel %vm428, %v519, -1e+30
  %v594 = vsel %vm429, %v522, -1e+30
  %v595 = vsel %vm430, %v525, -1e+30
  %v596 = vsel %vm431, %v528, -1e+30
  %v597 = vsel %vm432, %v531, -1e+30
  %v598 = vsel %vm433, %v534, -1e+30
  %v599 = vsel %vm434, %v537, -1e+30
  %v600 = vsel %vm435, %v540, -1e+30
  %v601 = vsel %vm436, %v543, -1e+30
  %v602 = vsel %vm437, %v546, -1e+30
  %v603 = vsel %vm438, %v549, -1e+30
  %v604 = vsel %vm439, %v552, -1e+30
  %v605 = vsel %vm440, %v555, -1e+30
  %v606 = vsel %vm441, %v558, -1e+30
  %v607 = vsel %vm442, %v561, -1e+30
  %v608 = vsel %vm443, %v564, -1e+30
  %v609 = vsel %vm444, %v567, -1e+30
  %v610 = vsel %vm445, %v570, -1e+30
  %v611 = vsel %vm446, %v573, -1e+30
  %v612 = vsel %vm447, %v576, -1e+30
  %v613 = vsel %vm448, %v579, -1e+30
  %v614 = vsel %vm449, %v582, -1e+30
  %v615 = vlaneseq
  %v616 = vshrl.u32 %v615, 7
  %v617 = vsub.s32 0, %v616
  %v618 = vrot.slane %v383, %v617
  %v619 = vlaneseq
  %v620 = vshrl.u32 %v619, 7
  %v621 = vsub.s32 0, %v620
  %v622 = vrot.slane %v384, %v621
  %vm623 = vcmp.gt.f32.partialorder %v583, %v618
  %vm624 = vcmp.gt.f32.partialorder %v583, %v622
  %vm625 = vcmp.gt.f32.partialorder %v584, %v618
  %vm626 = vcmp.gt.f32.partialorder %v584, %v622
  %vm627 = vcmp.gt.f32.partialorder %v585, %v618
  %vm628 = vcmp.gt.f32.partialorder %v585, %v622
  %vm629 = vcmp.gt.f32.partialorder %v586, %v618
  %vm630 = vcmp.gt.f32.partialorder %v586, %v622
  %vm631 = vcmp.gt.f32.partialorder %v587, %v618
  %vm632 = vcmp.gt.f32.partialorder %v587, %v622
  %vm633 = vcmp.gt.f32.partialorder %v588, %v618
  %vm634 = vcmp.gt.f32.partialorder %v588, %v622
  %vm635 = vcmp.gt.f32.partialorder %v589, %v618
  %vm636 = vcmp.gt.f32.partialorder %v589, %v622
  %vm637 = vcmp.gt.f32.partialorder %v590, %v618
  %vm638 = vcmp.gt.f32.partialorder %v590, %v622
  %vm639 = vcmp.gt.f32.partialorder %v591, %v618
  %vm640 = vcmp.gt.f32.partialorder %v591, %v622
  %vm641 = vcmp.gt.f32.partialorder %v592, %v618
  %vm642 = vcmp.gt.f32.partialorder %v592, %v622
  %vm643 = vcmp.gt.f32.partialorder %v593, %v618
  %vm644 = vcmp.gt.f32.partialorder %v593, %v622
  %vm645 = vcmp.gt.f32.partialorder %v594, %v618
  %vm646 = vcmp.gt.f32.partialorder %v594, %v622
  %vm647 = vcmp.gt.f32.partialorder %v595, %v618
  %vm648 = vcmp.gt.f32.partialorder %v595, %v622
  %vm649 = vcmp.gt.f32.partialorder %v596, %v618
  %vm650 = vcmp.gt.f32.partialorder %v596, %v622
  %vm651 = vcmp.gt.f32.partialorder %v597, %v618
  %vm652 = vcmp.gt.f32.partialorder %v597, %v622
  %vm653 = vcmp.gt.f32.partialorder %v598, %v618
  %vm654 = vcmp.gt.f32.partialorder %v598, %v622
  %vm655 = vcmp.gt.f32.partialorder %v599, %v618
  %vm656 = vcmp.gt.f32.partialorder %v599, %v622
  %vm657 = vcmp.gt.f32.partialorder %v600, %v618
  %vm658 = vcmp.gt.f32.partialorder %v600, %v622
  %vm659 = vcmp.gt.f32.partialorder %v601, %v618
  %vm660 = vcmp.gt.f32.partialorder %v601, %v622
  %vm661 = vcmp.gt.f32.partialorder %v602, %v618
  %vm662 = vcmp.gt.f32.partialorder %v602, %v622
  %vm663 = vcmp.gt.f32.partialorder %v603, %v618
  %vm664 = vcmp.gt.f32.partialorder %v603, %v622
  %vm665 = vcmp.gt.f32.partialorder %v604, %v618
  %vm666 = vcmp.gt.f32.partialorder %v604, %v622
  %vm667 = vcmp.gt.f32.partialorder %v605, %v618
  %vm668 = vcmp.gt.f32.partialorder %v605, %v622
  %vm669 = vcmp.gt.f32.partialorder %v606, %v618
  %vm670 = vcmp.gt.f32.partialorder %v606, %v622
  %vm671 = vcmp.gt.f32.partialorder %v607, %v618
  %vm672 = vcmp.gt.f32.partialorder %v607, %v622
  %vm673 = vcmp.gt.f32.partialorder %v608, %v618
  %vm674 = vcmp.gt.f32.partialorder %v608, %v622
  %vm675 = vcmp.gt.f32.partialorder %v609, %v618
  %vm676 = vcmp.gt.f32.partialorder %v609, %v622
  %vm677 = vcmp.gt.f32.partialorder %v610, %v618
  %vm678 = vcmp.gt.f32.partialorder %v610, %v622
  %vm679 = vcmp.gt.f32.partialorder %v611, %v618
  %vm680 = vcmp.gt.f32.partialorder %v611, %v622
  %vm681 = vcmp.gt.f32.partialorder %v612, %v618
  %vm682 = vcmp.gt.f32.partialorder %v612, %v622
  %vm683 = vcmp.gt.f32.partialorder %v613, %v618
  %vm684 = vcmp.gt.f32.partialorder %v613, %v622
  %vm685 = vcmp.gt.f32.partialorder %v614, %v618
  %vm686 = vcmp.gt.f32.partialorder %v614, %v622
  %vm687 = vcmp.eq.f32.partialorder %v583, %v618
  %vm688 = vcmp.eq.f32.partialorder %v583, %v622
  %vm689 = vcmp.eq.f32.partialorder %v584, %v618
  %vm690 = vcmp.eq.f32.partialorder %v584, %v622
  %vm691 = vcmp.eq.f32.partialorder %v585, %v618
  %vm692 = vcmp.eq.f32.partialorder %v585, %v622
  %vm693 = vcmp.eq.f32.partialorder %v586, %v618
  %vm694 = vcmp.eq.f32.partialorder %v586, %v622
  %vm695 = vcmp.eq.f32.partialorder %v587, %v618
  %vm696 = vcmp.eq.f32.partialorder %v587, %v622
  %vm697 = vcmp.eq.f32.partialorder %v588, %v618
  %vm698 = vcmp.eq.f32.partialorder %v588, %v622
  %vm699 = vcmp.eq.f32.partialorder %v589, %v618
  %vm700 = vcmp.eq.f32.partialorder %v589, %v622
  %vm701 = vcmp.eq.f32.partialorder %v590, %v618
  %vm702 = vcmp.eq.f32.partialorder %v590, %v622
  %vm703 = vcmp.eq.f32.partialorder %v591, %v618
  %vm704 = vcmp.eq.f32.partialorder %v591, %v622
  %vm705 = vcmp.eq.f32.partialorder %v592, %v618
  %vm706 = vcmp.eq.f32.partialorder %v592, %v622
  %vm707 = vcmp.eq.f32.partialorder %v593, %v618
  %vm708 = vcmp.eq.f32.partialorder %v593, %v622
  %vm709 = vcmp.eq.f32.partialorder %v594, %v618
  %vm710 = vcmp.eq.f32.partialorder %v594, %v622
  %vm711 = vcmp.eq.f32.partialorder %v595, %v618
  %vm712 = vcmp.eq.f32.partialorder %v595, %v622
  %vm713 = vcmp.eq.f32.partialorder %v596, %v618
  %vm714 = vcmp.eq.f32.partialorder %v596, %v622
  %vm715 = vcmp.eq.f32.partialorder %v597, %v618
  %vm716 = vcmp.eq.f32.partialorder %v597, %v622
  %vm717 = vcmp.eq.f32.partialorder %v598, %v618
  %vm718 = vcmp.eq.f32.partialorder %v598, %v622
  %vm719 = vcmp.eq.f32.partialorder %v599, %v618
  %vm720 = vcmp.eq.f32.partialorder %v599, %v622
  %vm721 = vcmp.eq.f32.partialorder %v600, %v618
  %vm722 = vcmp.eq.f32.partialorder %v600, %v622
  %vm723 = vcmp.eq.f32.partialorder %v601, %v618
  %vm724 = vcmp.eq.f32.partialorder %v601, %v622
  %vm725 = vcmp.eq.f32.partialorder %v602, %v618
  %vm726 = vcmp.eq.f32.partialorder %v602, %v622
  %vm727 = vcmp.eq.f32.partialorder %v603, %v618
  %vm728 = vcmp.eq.f32.partialorder %v603, %v622
  %vm729 = vcmp.eq.f32.partialorder %v604, %v618
  %vm730 = vcmp.eq.f32.partialorder %v604, %v622
  %vm731 = vcmp.eq.f32.partialorder %v605, %v618
  %vm732 = vcmp.eq.f32.partialorder %v605, %v622
  %vm733 = vcmp.eq.f32.partialorder %v606, %v618
  %vm734 = vcmp.eq.f32.partialorder %v606, %v622
  %vm735 = vcmp.eq.f32.partialorder %v607, %v618
  %vm736 = vcmp.eq.f32.partialorder %v607, %v622
  %vm737 = vcmp.eq.f32.partialorder %v608, %v618
  %vm738 = vcmp.eq.f32.partialorder %v608, %v622
  %vm739 = vcmp.eq.f32.partialorder %v609, %v618
  %vm740 = vcmp.eq.f32.partialorder %v609, %v622
  %vm741 = vcmp.eq.f32.partialorder %v610, %v618
  %vm742 = vcmp.eq.f32.partialorder %v610, %v622
  %vm743 = vcmp.eq.f32.partialorder %v611, %v618
  %vm744 = vcmp.eq.f32.partialorder %v611, %v622
  %vm745 = vcmp.eq.f32.partialorder %v612, %v618
  %vm746 = vcmp.eq.f32.partialorder %v612, %v622
  %vm747 = vcmp.eq.f32.partialorder %v613, %v618
  %vm748 = vcmp.eq.f32.partialorder %v613, %v622
  %vm749 = vcmp.eq.f32.partialorder %v614, %v618
  %vm750 = vcmp.eq.f32.partialorder %v614, %v622
  %vm751 = vcmp.lt.s32.totalorder %v386, %v228
  %vm752 = vcmp.lt.s32.totalorder %v386, %v229
  %vm753 = vcmp.lt.s32.totalorder %v387, %v228
  %vm754 = vcmp.lt.s32.totalorder %v387, %v229
  %vm755 = vcmp.lt.s32.totalorder %v388, %v228
  %vm756 = vcmp.lt.s32.totalorder %v388, %v229
  %vm757 = vcmp.lt.s32.totalorder %v389, %v228
  %vm758 = vcmp.lt.s32.totalorder %v389, %v229
  %vm759 = vcmp.lt.s32.totalorder %v390, %v228
  %vm760 = vcmp.lt.s32.totalorder %v390, %v229
  %vm761 = vcmp.lt.s32.totalorder %v391, %v228
  %vm762 = vcmp.lt.s32.totalorder %v391, %v229
  %vm763 = vcmp.lt.s32.totalorder %v392, %v228
  %vm764 = vcmp.lt.s32.totalorder %v392, %v229
  %vm765 = vcmp.lt.s32.totalorder %v393, %v228
  %vm766 = vcmp.lt.s32.totalorder %v393, %v229
  %vm767 = vcmp.lt.s32.totalorder %v394, %v228
  %vm768 = vcmp.lt.s32.totalorder %v394, %v229
  %vm769 = vcmp.lt.s32.totalorder %v395, %v228
  %vm770 = vcmp.lt.s32.totalorder %v395, %v229
  %vm771 = vcmp.lt.s32.totalorder %v396, %v228
  %vm772 = vcmp.lt.s32.totalorder %v396, %v229
  %vm773 = vcmp.lt.s32.totalorder %v397, %v228
  %vm774 = vcmp.lt.s32.totalorder %v397, %v229
  %vm775 = vcmp.lt.s32.totalorder %v398, %v228
  %vm776 = vcmp.lt.s32.totalorder %v398, %v229
  %vm777 = vcmp.lt.s32.totalorder %v399, %v228
  %vm778 = vcmp.lt.s32.totalorder %v399, %v229
  %vm779 = vcmp.lt.s32.totalorder %v400, %v228
  %vm780 = vcmp.lt.s32.totalorder %v400, %v229
  %vm781 = vcmp.lt.s32.totalorder %v401, %v228
  %vm782 = vcmp.lt.s32.totalorder %v401, %v229
  %vm783 = vcmp.lt.s32.totalorder %v402, %v228
  %vm784 = vcmp.lt.s32.totalorder %v402, %v229
  %vm785 = vcmp.lt.s32.totalorder %v403, %v228
  %vm786 = vcmp.lt.s32.totalorder %v403, %v229
  %vm787 = vcmp.lt.s32.totalorder %v404, %v228
  %vm788 = vcmp.lt.s32.totalorder %v404, %v229
  %vm789 = vcmp.lt.s32.totalorder %v405, %v228
  %vm790 = vcmp.lt.s32.totalorder %v405, %v229
  %vm791 = vcmp.lt.s32.totalorder %v406, %v228
  %vm792 = vcmp.lt.s32.totalorder %v406, %v229
  %vm793 = vcmp.lt.s32.totalorder %v407, %v228
  %vm794 = vcmp.lt.s32.totalorder %v407, %v229
  %vm795 = vcmp.lt.s32.totalorder %v408, %v228
  %vm796 = vcmp.lt.s32.totalorder %v408, %v229
  %vm797 = vcmp.lt.s32.totalorder %v409, %v228
  %vm798 = vcmp.lt.s32.totalorder %v409, %v229
  %vm799 = vcmp.lt.s32.totalorder %v410, %v228
  %vm800 = vcmp.lt.s32.totalorder %v410, %v229
  %vm801 = vcmp.lt.s32.totalorder %v411, %v228
  %vm802 = vcmp.lt.s32.totalorder %v411, %v229
  %vm803 = vcmp.lt.s32.totalorder %v412, %v228
  %vm804 = vcmp.lt.s32.totalorder %v412, %v229
  %vm805 = vcmp.lt.s32.totalorder %v413, %v228
  %vm806 = vcmp.lt.s32.totalorder %v413, %v229
  %vm807 = vcmp.lt.s32.totalorder %v414, %v228
  %vm808 = vcmp.lt.s32.totalorder %v414, %v229
  %vm809 = vcmp.lt.s32.totalorder %v415, %v228
  %vm810 = vcmp.lt.s32.totalorder %v415, %v229
  %vm811 = vcmp.lt.s32.totalorder %v416, %v228
  %vm812 = vcmp.lt.s32.totalorder %v416, %v229
  %vm813 = vcmp.lt.s32.totalorder %v417, %v228
  %vm814 = vcmp.lt.s32.totalorder %v417, %v229
  %vm815 = vmand %vm687, %vm751
  %vm816 = vmand %vm688, %vm752
  %vm817 = vmand %vm689, %vm753
  %vm818 = vmand %vm690, %vm754
  %vm819 = vmand %vm691, %vm755
  %vm820 = vmand %vm692, %vm756
  %vm821 = vmand %vm693, %vm757
  %vm822 = vmand %vm694, %vm758
  %vm823 = vmand %vm695, %vm759
  %vm824 = vmand %vm696, %vm760
  %vm825 = vmand %vm697, %vm761
  %vm826 = vmand %vm698, %vm762
  %vm827 = vmand %vm699, %vm763
  %vm828 = vmand %vm700, %vm764
  %vm829 = vmand %vm701, %vm765
  %vm830 = vmand %vm702, %vm766
  %vm831 = vmand %vm703, %vm767
  %vm832 = vmand %vm704, %vm768
  %vm833 = vmand %vm705, %vm769
  %vm834 = vmand %vm706, %vm770
  %vm835 = vmand %vm707, %vm771
  %vm836 = vmand %vm708, %vm772
  %vm837 = vmand %vm709, %vm773
  %vm838 = vmand %vm710, %vm774
  %vm839 = vmand %vm711, %vm775
  %vm840 = vmand %vm712, %vm776
  %vm841 = vmand %vm713, %vm777
  %vm842 = vmand %vm714, %vm778
  %vm843 = vmand %vm715, %vm779
  %vm844 = vmand %vm716, %vm780
  %vm845 = vmand %vm717, %vm781
  %vm846 = vmand %vm718, %vm782
  %vm847 = vmand %vm719, %vm783
  %vm848 = vmand %vm720, %vm784
  %vm849 = vmand %vm721, %vm785
  %vm850 = vmand %vm722, %vm786
  %vm851 = vmand %vm723, %vm787
  %vm852 = vmand %vm724, %vm788
  %vm853 = vmand %vm725, %vm789
  %vm854 = vmand %vm726, %vm790
  %vm855 = vmand %vm727, %vm791
  %vm856 = vmand %vm728, %vm792
  %vm857 = vmand %vm729, %vm793
  %vm858 = vmand %vm730, %vm794
  %vm859 = vmand %vm731, %vm795
  %vm860 = vmand %vm732, %vm796
  %vm861 = vmand %vm733, %vm797
  %vm862 = vmand %vm734, %vm798
  %vm863 = vmand %vm735, %vm799
  %vm864 = vmand %vm736, %vm800
  %vm865 = vmand %vm737, %vm801
  %vm866 = vmand %vm738, %vm802
  %vm867 = vmand %vm739, %vm803
  %vm868 = vmand %vm740, %vm804
  %vm869 = vmand %vm741, %vm805
  %vm870 = vmand %vm742, %vm806
  %vm871 = vmand %vm743, %vm807
  %vm872 = vmand %vm744, %vm808
  %vm873 = vmand %vm745, %vm809
  %vm874 = vmand %vm746, %vm810
  %vm875 = vmand %vm747, %vm811
  %vm876 = vmand %vm748, %vm812
  %vm877 = vmand %vm749, %vm813
  %vm878 = vmand %vm750, %vm814
  %vm879 = vcmp.ne.s32.totalorder %v386, %v228
  %vm880 = vcmp.ne.s32.totalorder %v386, %v229
  %vm881 = vcmp.ne.s32.totalorder %v387, %v228
  %vm882 = vcmp.ne.s32.totalorder %v387, %v229
  %vm883 = vcmp.ne.s32.totalorder %v388, %v228
  %vm884 = vcmp.ne.s32.totalorder %v388, %v229
  %vm885 = vcmp.ne.s32.totalorder %v389, %v228
  %vm886 = vcmp.ne.s32.totalorder %v389, %v229
  %vm887 = vcmp.ne.s32.totalorder %v390, %v228
  %vm888 = vcmp.ne.s32.totalorder %v390, %v229
  %vm889 = vcmp.ne.s32.totalorder %v391, %v228
  %vm890 = vcmp.ne.s32.totalorder %v391, %v229
  %vm891 = vcmp.ne.s32.totalorder %v392, %v228
  %vm892 = vcmp.ne.s32.totalorder %v392, %v229
  %vm893 = vcmp.ne.s32.totalorder %v393, %v228
  %vm894 = vcmp.ne.s32.totalorder %v393, %v229
  %vm895 = vcmp.ne.s32.totalorder %v394, %v228
  %vm896 = vcmp.ne.s32.totalorder %v394, %v229
  %vm897 = vcmp.ne.s32.totalorder %v395, %v228
  %vm898 = vcmp.ne.s32.totalorder %v395, %v229
  %vm899 = vcmp.ne.s32.totalorder %v396, %v228
  %vm900 = vcmp.ne.s32.totalorder %v396, %v229
  %vm901 = vcmp.ne.s32.totalorder %v397, %v228
  %vm902 = vcmp.ne.s32.totalorder %v397, %v229
  %vm903 = vcmp.ne.s32.totalorder %v398, %v228
  %vm904 = vcmp.ne.s32.totalorder %v398, %v229
  %vm905 = vcmp.ne.s32.totalorder %v399, %v228
  %vm906 = vcmp.ne.s32.totalorder %v399, %v229
  %vm907 = vcmp.ne.s32.totalorder %v400, %v228
  %vm908 = vcmp.ne.s32.totalorder %v400, %v229
  %vm909 = vcmp.ne.s32.totalorder %v401, %v228
  %vm910 = vcmp.ne.s32.totalorder %v401, %v229
  %vm911 = vcmp.ne.s32.totalorder %v402, %v228
  %vm912 = vcmp.ne.s32.totalorder %v402, %v229
  %vm913 = vcmp.ne.s32.totalorder %v403, %v228
  %vm914 = vcmp.ne.s32.totalorder %v403, %v229
  %vm915 = vcmp.ne.s32.totalorder %v404, %v228
  %vm916 = vcmp.ne.s32.totalorder %v404, %v229
  %vm917 = vcmp.ne.s32.totalorder %v405, %v228
  %vm918 = vcmp.ne.s32.totalorder %v405, %v229
  %vm919 = vcmp.ne.s32.totalorder %v406, %v228
  %vm920 = vcmp.ne.s32.totalorder %v406, %v229
  %vm921 = vcmp.ne.s32.totalorder %v407, %v228
  %vm922 = vcmp.ne.s32.totalorder %v407, %v229
  %vm923 = vcmp.ne.s32.totalorder %v408, %v228
  %vm924 = vcmp.ne.s32.totalorder %v408, %v229
  %vm925 = vcmp.ne.s32.totalorder %v409, %v228
  %vm926 = vcmp.ne.s32.totalorder %v409, %v229
  %vm927 = vcmp.ne.s32.totalorder %v410, %v228
  %vm928 = vcmp.ne.s32.totalorder %v410, %v229
  %vm929 = vcmp.ne.s32.totalorder %v411, %v228
  %vm930 = vcmp.ne.s32.totalorder %v411, %v229
  %vm931 = vcmp.ne.s32.totalorder %v412, %v228
  %vm932 = vcmp.ne.s32.totalorder %v412, %v229
  %vm933 = vcmp.ne.s32.totalorder %v413, %v228
  %vm934 = vcmp.ne.s32.totalorder %v413, %v229
  %vm935 = vcmp.ne.s32.totalorder %v414, %v228
  %vm936 = vcmp.ne.s32.totalorder %v414, %v229
  %vm937 = vcmp.ne.s32.totalorder %v415, %v228
  %vm938 = vcmp.ne.s32.totalorder %v415, %v229
  %vm939 = vcmp.ne.s32.totalorder %v416, %v228
  %vm940 = vcmp.ne.s32.totalorder %v416, %v229
  %vm941 = vcmp.ne.s32.totalorder %v417, %v228
  %vm942 = vcmp.ne.s32.totalorder %v417, %v229
  %vm943 = vmand %vm623, %vm879
  %vm944 = vmand %vm624, %vm880
  %vm945 = vmand %vm625, %vm881
  %vm946 = vmand %vm626, %vm882
  %vm947 = vmand %vm627, %vm883
  %vm948 = vmand %vm628, %vm884
  %vm949 = vmand %vm629, %vm885
  %vm950 = vmand %vm630, %vm886
  %vm951 = vmand %vm631, %vm887
  %vm952 = vmand %vm632, %vm888
  %vm953 = vmand %vm633, %vm889
  %vm954 = vmand %vm634, %vm890
  %vm955 = vmand %vm635, %vm891
  %vm956 = vmand %vm636, %vm892
  %vm957 = vmand %vm637, %vm893
  %vm958 = vmand %vm638, %vm894
  %vm959 = vmand %vm639, %vm895
  %vm960 = vmand %vm640, %vm896
  %vm961 = vmand %vm641, %vm897
  %vm962 = vmand %vm642, %vm898
  %vm963 = vmand %vm643, %vm899
  %vm964 = vmand %vm644, %vm900
  %vm965 = vmand %vm645, %vm901
  %vm966 = vmand %vm646, %vm902
  %vm967 = vmand %vm647, %vm903
  %vm968 = vmand %vm648, %vm904
  %vm969 = vmand %vm649, %vm905
  %vm970 = vmand %vm650, %vm906
  %vm971 = vmand %vm651, %vm907
  %vm972 = vmand %vm652, %vm908
  %vm973 = vmand %vm653, %vm909
  %vm974 = vmand %vm654, %vm910
  %vm975 = vmand %vm655, %vm911
  %vm976 = vmand %vm656, %vm912
  %vm977 = vmand %vm657, %vm913
  %vm978 = vmand %vm658, %vm914
  %vm979 = vmand %vm659, %vm915
  %vm980 = vmand %vm660, %vm916
  %vm981 = vmand %vm661, %vm917
  %vm982 = vmand %vm662, %vm918
  %vm983 = vmand %vm663, %vm919
  %vm984 = vmand %vm664, %vm920
  %vm985 = vmand %vm665, %vm921
  %vm986 = vmand %vm666, %vm922
  %vm987 = vmand %vm667, %vm923
  %vm988 = vmand %vm668, %vm924
  %vm989 = vmand %vm669, %vm925
  %vm990 = vmand %vm670, %vm926
  %vm991 = vmand %vm671, %vm927
  %vm992 = vmand %vm672, %vm928
  %vm993 = vmand %vm673, %vm929
  %vm994 = vmand %vm674, %vm930
  %vm995 = vmand %vm675, %vm931
  %vm996 = vmand %vm676, %vm932
  %vm997 = vmand %vm677, %vm933
  %vm998 = vmand %vm678, %vm934
  %vm999 = vmand %vm679, %vm935
  %vm1000 = vmand %vm680, %vm936
  %vm1001 = vmand %vm681, %vm937
  %vm1002 = vmand %vm682, %vm938
  %vm1003 = vmand %vm683, %vm939
  %vm1004 = vmand %vm684, %vm940
  %vm1005 = vmand %vm685, %vm941
  %vm1006 = vmand %vm686, %vm942
  %vm1007 = vmor %vm943, %vm815
  %vm1008 = vmor %vm944, %vm816
  %vm1009 = vmor %vm945, %vm817
  %vm1010 = vmor %vm946, %vm818
  %vm1011 = vmor %vm947, %vm819
  %vm1012 = vmor %vm948, %vm820
  %vm1013 = vmor %vm949, %vm821
  %vm1014 = vmor %vm950, %vm822
  %vm1015 = vmor %vm951, %vm823
  %vm1016 = vmor %vm952, %vm824
  %vm1017 = vmor %vm953, %vm825
  %vm1018 = vmor %vm954, %vm826
  %vm1019 = vmor %vm955, %vm827
  %vm1020 = vmor %vm956, %vm828
  %vm1021 = vmor %vm957, %vm829
  %vm1022 = vmor %vm958, %vm830
  %vm1023 = vmor %vm959, %vm831
  %vm1024 = vmor %vm960, %vm832
  %vm1025 = vmor %vm961, %vm833
  %vm1026 = vmor %vm962, %vm834
  %vm1027 = vmor %vm963, %vm835
  %vm1028 = vmor %vm964, %vm836
  %vm1029 = vmor %vm965, %vm837
  %vm1030 = vmor %vm966, %vm838
  %vm1031 = vmor %vm967, %vm839
  %vm1032 = vmor %vm968, %vm840
  %vm1033 = vmor %vm969, %vm841
  %vm1034 = vmor %vm970, %vm842
  %vm1035 = vmor %vm971, %vm843
  %vm1036 = vmor %vm972, %vm844
  %vm1037 = vmor %vm973, %vm845
  %vm1038 = vmor %vm974, %vm846
  %vm1039 = vmor %vm975, %vm847
  %vm1040 = vmor %vm976, %vm848
  %vm1041 = vmor %vm977, %vm849
  %vm1042 = vmor %vm978, %vm850
  %vm1043 = vmor %vm979, %vm851
  %vm1044 = vmor %vm980, %vm852
  %vm1045 = vmor %vm981, %vm853
  %vm1046 = vmor %vm982, %vm854
  %vm1047 = vmor %vm983, %vm855
  %vm1048 = vmor %vm984, %vm856
  %vm1049 = vmor %vm985, %vm857
  %vm1050 = vmor %vm986, %vm858
  %vm1051 = vmor %vm987, %vm859
  %vm1052 = vmor %vm988, %vm860
  %vm1053 = vmor %vm989, %vm861
  %vm1054 = vmor %vm990, %vm862
  %vm1055 = vmor %vm991, %vm863
  %vm1056 = vmor %vm992, %vm864
  %vm1057 = vmor %vm993, %vm865
  %vm1058 = vmor %vm994, %vm866
  %vm1059 = vmor %vm995, %vm867
  %vm1060 = vmor %vm996, %vm868
  %vm1061 = vmor %vm997, %vm869
  %vm1062 = vmor %vm998, %vm870
  %vm1063 = vmor %vm999, %vm871
  %vm1064 = vmor %vm1000, %vm872
  %vm1065 = vmor %vm1001, %vm873
  %vm1066 = vmor %vm1002, %vm874
  %vm1067 = vmor %vm1003, %vm875
  %vm1068 = vmor %vm1004, %vm876
  %vm1069 = vmor %vm1005, %vm877
  %vm1070 = vmor %vm1006, %vm878
  %v1071 = vsel %vm1007, 1.0, 0.0
  %v1072 = vsel %vm1008, 1.0, 0.0
  %v1073 = vsel %vm1009, 1.0, 0.0
  %v1074 = vsel %vm1010, 1.0, 0.0
  %v1075 = vsel %vm1011, 1.0, 0.0
  %v1076 = vsel %vm1012, 1.0, 0.0
  %v1077 = vsel %vm1013, 1.0, 0.0
  %v1078 = vsel %vm1014, 1.0, 0.0
  %v1079 = vsel %vm1015, 1.0, 0.0
  %v1080 = vsel %vm1016, 1.0, 0.0
  %v1081 = vsel %vm1017, 1.0, 0.0
  %v1082 = vsel %vm1018, 1.0, 0.0
  %v1083 = vsel %vm1019, 1.0, 0.0
  %v1084 = vsel %vm1020, 1.0, 0.0
  %v1085 = vsel %vm1021, 1.0, 0.0
  %v1086 = vsel %vm1022, 1.0, 0.0
  %v1087 = vsel %vm1023, 1.0, 0.0
  %v1088 = vsel %vm1024, 1.0, 0.0
  %v1089 = vsel %vm1025, 1.0, 0.0
  %v1090 = vsel %vm1026, 1.0, 0.0
  %v1091 = vsel %vm1027, 1.0, 0.0
  %v1092 = vsel %vm1028, 1.0, 0.0
  %v1093 = vsel %vm1029, 1.0, 0.0
  %v1094 = vsel %vm1030, 1.0, 0.0
  %v1095 = vsel %vm1031, 1.0, 0.0
  %v1096 = vsel %vm1032, 1.0, 0.0
  %v1097 = vsel %vm1033, 1.0, 0.0
  %v1098 = vsel %vm1034, 1.0, 0.0
  %v1099 = vsel %vm1035, 1.0, 0.0
  %v1100 = vsel %vm1036, 1.0, 0.0
  %v1101 = vsel %vm1037, 1.0, 0.0
  %v1102 = vsel %vm1038, 1.0, 0.0
  %v1103 = vsel %vm1039, 1.0, 0.0
  %v1104 = vsel %vm1040, 1.0, 0.0
  %v1105 = vsel %vm1041, 1.0, 0.0
  %v1106 = vsel %vm1042, 1.0, 0.0
  %v1107 = vsel %vm1043, 1.0, 0.0
  %v1108 = vsel %vm1044, 1.0, 0.0
  %v1109 = vsel %vm1045, 1.0, 0.0
  %v1110 = vsel %vm1046, 1.0, 0.0
  %v1111 = vsel %vm1047, 1.0, 0.0
  %v1112 = vsel %vm1048, 1.0, 0.0
  %v1113 = vsel %vm1049, 1.0, 0.0
  %v1114 = vsel %vm1050, 1.0, 0.0
  %v1115 = vsel %vm1051, 1.0, 0.0
  %v1116 = vsel %vm1052, 1.0, 0.0
  %v1117 = vsel %vm1053, 1.0, 0.0
  %v1118 = vsel %vm1054, 1.0, 0.0
  %v1119 = vsel %vm1055, 1.0, 0.0
  %v1120 = vsel %vm1056, 1.0, 0.0
  %v1121 = vsel %vm1057, 1.0, 0.0
  %v1122 = vsel %vm1058, 1.0, 0.0
  %v1123 = vsel %vm1059, 1.0, 0.0
  %v1124 = vsel %vm1060, 1.0, 0.0
  %v1125 = vsel %vm1061, 1.0, 0.0
  %v1126 = vsel %vm1062, 1.0, 0.0
  %v1127 = vsel %vm1063, 1.0, 0.0
  %v1128 = vsel %vm1064, 1.0, 0.0
  %v1129 = vsel %vm1065, 1.0, 0.0
  %v1130 = vsel %vm1066, 1.0, 0.0
  %v1131 = vsel %vm1067, 1.0, 0.0
  %v1132 = vsel %vm1068, 1.0, 0.0
  %v1133 = vsel %vm1069, 1.0, 0.0
  %v1134 = vsel %vm1070, 1.0, 0.0
  %v1135 = vadd.f32 %v1071, %v1073
  %v1136 = vadd.f32 %v1135, %v1075
  %v1137 = vadd.f32 %v1136, %v1077
  %v1138 = vadd.f32 %v1137, %v1079
  %v1139 = vadd.f32 %v1138, %v1081
  %v1140 = vadd.f32 %v1139, %v1083
  %v1141 = vadd.f32 %v1140, %v1085
  %v1142 = vadd.f32 %v1141, %v1087
  %v1143 = vadd.f32 %v1142, %v1089
  %v1144 = vadd.f32 %v1143, %v1091
  %v1145 = vadd.f32 %v1144, %v1093
  %v1146 = vadd.f32 %v1145, %v1095
  %v1147 = vadd.f32 %v1146, %v1097
  %v1148 = vadd.f32 %v1147, %v1099
  %v1149 = vadd.f32 %v1148, %v1101
  %v1150 = vadd.f32 %v1149, %v1103
  %v1151 = vadd.f32 %v1150, %v1105
  %v1152 = vadd.f32 %v1151, %v1107
  %v1153 = vadd.f32 %v1152, %v1109
  %v1154 = vadd.f32 %v1153, %v1111
  %v1155 = vadd.f32 %v1154, %v1113
  %v1156 = vadd.f32 %v1155, %v1115
  %v1157 = vadd.f32 %v1156, %v1117
  %v1158 = vadd.f32 %v1157, %v1119
  %v1159 = vadd.f32 %v1158, %v1121
  %v1160 = vadd.f32 %v1159, %v1123
  %v1161 = vadd.f32 %v1160, %v1125
  %v1162 = vadd.f32 %v1161, %v1127
  %v1163 = vadd.f32 %v1162, %v1129
  %v1164 = vadd.f32 %v1163, %v1131
  %v1165 = vadd.f32 %v1164, %v1133
  %v1166 = vrot.slane %v1165, 4
  %v1167 = vadd.f32 %v1165, %v1166
  %v1168 = vrot.slane %v1167, 2
  %v1169 = vadd.f32 %v1167, %v1168
  %v1170 = vrot.slane %v1169, 1
  %v1171 = vadd.f32 %v1169, %v1170
  %v1172 = vadd.f32 %v1072, %v1074
  %v1173 = vadd.f32 %v1172, %v1076
  %v1174 = vadd.f32 %v1173, %v1078
  %v1175 = vadd.f32 %v1174, %v1080
  %v1176 = vadd.f32 %v1175, %v1082
  %v1177 = vadd.f32 %v1176, %v1084
  %v1178 = vadd.f32 %v1177, %v1086
  %v1179 = vadd.f32 %v1178, %v1088
  %v1180 = vadd.f32 %v1179, %v1090
  %v1181 = vadd.f32 %v1180, %v1092
  %v1182 = vadd.f32 %v1181, %v1094
  %v1183 = vadd.f32 %v1182, %v1096
  %v1184 = vadd.f32 %v1183, %v1098
  %v1185 = vadd.f32 %v1184, %v1100
  %v1186 = vadd.f32 %v1185, %v1102
  %v1187 = vadd.f32 %v1186, %v1104
  %v1188 = vadd.f32 %v1187, %v1106
  %v1189 = vadd.f32 %v1188, %v1108
  %v1190 = vadd.f32 %v1189, %v1110
  %v1191 = vadd.f32 %v1190, %v1112
  %v1192 = vadd.f32 %v1191, %v1114
  %v1193 = vadd.f32 %v1192, %v1116
  %v1194 = vadd.f32 %v1193, %v1118
  %v1195 = vadd.f32 %v1194, %v1120
  %v1196 = vadd.f32 %v1195, %v1122
  %v1197 = vadd.f32 %v1196, %v1124
  %v1198 = vadd.f32 %v1197, %v1126
  %v1199 = vadd.f32 %v1198, %v1128
  %v1200 = vadd.f32 %v1199, %v1130
  %v1201 = vadd.f32 %v1200, %v1132
  %v1202 = vadd.f32 %v1201, %v1134
  %v1203 = vrot.slane %v1202, 4
  %v1204 = vadd.f32 %v1202, %v1203
  %v1205 = vrot.slane %v1204, 2
  %v1206 = vadd.f32 %v1204, %v1205
  %v1207 = vrot.slane %v1206, 1
  %v1208 = vadd.f32 %v1206, %v1207
  %v1209 = vcvt.f32.s32.to.zero.pseudo %v1171
  %v1210 = vcvt.f32.s32.to.zero.pseudo %v1208
  %vm1211 = vcmp.ge.s32.totalorder %v386, 1
  %vm1212 = vcmp.ge.s32.totalorder %v387, 1
  %vm1213 = vcmp.ge.s32.totalorder %v388, 1
  %vm1214 = vcmp.le.s32.totalorder %v386, 19
  %vm1215 = vcmp.le.s32.totalorder %v387, 19
  %vm1216 = vcmp.le.s32.totalorder %v388, 19
  %vm1217 = vmand %vm1211, %vm1214
  %vm1218 = vmand %vm1212, %vm1215
  %vm1219 = vmand %vm1213, %vm1216
  %v1220 = vsub.s32 %v386, 1
  %v1221 = vsub.s32 %v387, 1
  %v1222 = vsub.s32 %v388, 1
  %vm1223 = vcmp.eq.s32.totalorder %v1220, %v1209
  %vm1224 = vcmp.eq.s32.totalorder %v1220, %v1210
  %vm1225 = vcmp.eq.s32.totalorder %v1221, %v1209
  %vm1226 = vcmp.eq.s32.totalorder %v1221, %v1210
  %vm1227 = vcmp.eq.s32.totalorder %v1222, %v1209
  %vm1228 = vcmp.eq.s32.totalorder %v1222, %v1210
  %vm1229 = vmand %vm1217, %vm1223
  %vm1230 = vmand %vm1217, %vm1224
  %vm1231 = vmand %vm1218, %vm1225
  %vm1232 = vmand %vm1218, %vm1226
  %vm1233 = vmand %vm1219, %vm1227
  %vm1234 = vmand %vm1219, %vm1228
  %vm1235 = vcmp.eq.s32.totalorder %v386, 0
  %vm1236 = vcmp.eq.s32.totalorder %v387, 0
  %vm1237 = vcmp.eq.s32.totalorder %v388, 0
  %v1238 = vsel %vm1229, 1.0, 0.0
  %v1239 = vsel %vm1230, 1.0, 0.0
  %v1240 = vsel %vm1231, 1.0, 0.0
  %v1241 = vsel %vm1232, 1.0, 0.0
  %v1242 = vsel %vm1233, 1.0, 0.0
  %v1243 = vsel %vm1234, 1.0, 0.0
  %v1244 = vsel %vm1235, %v310, %v1238
  %v1245 = vsel %vm1235, %v314, %v1239
  %v1246 = vsel %vm1236, %v310, %v1240
  %v1247 = vsel %vm1236, %v314, %v1241
  %v1248 = vsel %vm1237, %v310, %v1242
  %v1249 = vsel %vm1237, %v314, %v1243
  %1250 = vmatprep.subr.mxu0 0.0
  %1251 = vmatpush1.msra.mxu0 %v48
  %1252 = vmatprep.subr.mxu0 0.0
  %1253 = vmatpush1.msra.mxu0 %v49
  %1254 = vmatprep.subr.mxu0 0.0
  %1255 = vmatpush1.msra.mxu0 %v50
  %1256 = vmatprep.subr.mxu0 0.0
  %1257 = vmatpush1.msra.mxu0 %v51
  %1258 = vmatprep.subr.mxu0 0.0
  %1259 = vmatpush1.msra.mxu0 %v52
  %1260 = vmatprep.subr.mxu0 0.0
  %1261 = vmatpush1.msra.mxu0 %v53
  %1262 = vmatprep.subr.mxu0 0.0
  %1263 = vmatpush1.msra.mxu0 %v54
  %1264 = vmatprep.subr.mxu0 0.0
  %1265 = vmatpush1.msra.mxu0 %v55
  %1266 = vmatprep.subr.mxu0 0.0
  %1267 = vmatpush1.msra.mxu0 %v56
  %1268 = vmatprep.subr.mxu0 0.0
  %1269 = vmatpush1.msra.mxu0 %v57
  %1270 = vmatprep.subr.mxu0 0.0
  %1271 = vmatpush1.msra.mxu0 %v58
  %1272 = vmatprep.subr.mxu0 0.0
  %1273 = vmatpush1.msra.mxu0 %v59
  %1274 = vmatprep.subr.mxu0 0.0
  %1275 = vmatpush1.msra.mxu0 %v60
  %1276 = vmatprep.subr.mxu0 0.0
  %1277 = vmatpush1.msra.mxu0 %v61
  %1278 = vmatprep.subr.mxu0 0.0
  %1279 = vmatpush1.msra.mxu0 %v62
  %1280 = vmatprep.subr.mxu0 0.0
  %1281 = vmatpush1.msra.mxu0 %v63
  %1282 = vmatprep.subr.mxu0 0.0
  %1283 = vmatpush1.msra.mxu0 %v64
  %1284 = vmatprep.subr.mxu0 0.0
  %1285 = vmatpush1.msra.mxu0 %v65
  %1286 = vmatprep.subr.mxu0 0.0
  %1287 = vmatpush1.msra.mxu0 %v66
  %1288 = vmatprep.subr.mxu0 0.0
  %1289 = vmatpush1.msra.mxu0 %v67
  %1290 = vmatprep.subr.mxu0 0.0
  %1291 = vmatpush1.msra.mxu0 %v68
  %1292 = vmatprep.subr.mxu0 0.0
  %1293 = vmatpush1.msra.mxu0 %v69
  %1294 = vmatprep.subr.mxu0 0.0
  %1295 = vmatpush1.msra.mxu0 %v70
  %1296 = vmatprep.subr.mxu0 0.0
  %1297 = vmatpush1.msra.mxu0 %v71
  %1298 = vmatprep.subr.mxu0 0.0
  %1299 = vmatpush1.msra.mxu0 %v72
  %1300 = vmatprep.subr.mxu0 0.0
  %1301 = vmatpush1.msra.mxu0 %v73
  %1302 = vmatprep.subr.mxu0 0.0
  %1303 = vmatpush1.msra.mxu0 %v74
  %1304 = vmatprep.subr.mxu0 0.0
  %1305 = vmatpush1.msra.mxu0 %v75
  %1306 = vmatprep.subr.mxu0 0.0
  %1307 = vmatpush1.msra.mxu0 %v76
  %1308 = vmatprep.subr.mxu0 0.0
  %1309 = vmatpush1.msra.mxu0 %v77
  %1310 = vmatprep.subr.mxu0 0.0
  %1311 = vmatpush1.msra.mxu0 %v78
  %1312 = vmatprep.subr.mxu0 0.0
  %1313 = vmatpush1.msra.mxu0 %v79
  %1314 = vmatprep.mubr.f32.mxu0 %v1245
  %1315 = vmatmul.mubr.f32.gmra.mrb[0].mxu0 %v1244
  %v1316 = vpop.f32.mrb[0].mxu0
  %v1317 = vadd.f32 0.0, %v1316
  %v1318 = vpop.f32.mrb[0].mxu0
  %1319 = vmatprep.mubr.f32.mxu0 %v1247
  %1320 = vmatmul.mubr.f32.gmra.mrb[0].mxu0 %v1246
  %v1321 = vpop.f32.mrb[0].mxu0
  %v1322 = vadd.f32 0.0, %v1321
  %v1323 = vpop.f32.mrb[0].mxu0
  %1324 = vmatprep.mubr.f32.mxu0 %v1249
  %1325 = vmatmul.mubr.f32.gmra.mrb[0].mxu0 %v1248
  %v1326 = vpop.f32.mrb[0].mxu0
  %v1327 = vadd.f32 0.0, %v1326
  %v1328 = vpop.f32.mrb[0].mxu0
  %1329 = vdwg.mxu0
  %vm1330 = vcmask 253952
  %v1331 = vsel %vm1330, %v1317, 0.0
  %1332 = vadd.xlane.f32.xlu0 %v1331
  %v1333 = vpop.xlane.xlu0 %1332
  %v1334 = vrcp.pop 32.0
  %v1335 = vmul.f32 %v1333, %v1334
  %v1336 = vsub.f32 %v1317, %v1335
  %v1337 = vmul.f32 %v1336, %v1336
  %v1338 = vsel %vm1330, %v1337, 0.0
  %1339 = vadd.xlane.f32.xlu0 %v1338
  %v1340 = vpop.xlane.xlu0 %1339
  %v1341 = vmul.f32 %v1340, %v1334
  %v1342 = vadd.f32 %v1341, 1e-06
  %v1343 = vrsqrt.pop %v1342
  %v1344 = vmul.f32 %v1336, %v1343
  %v1345 = vld [vmem:[%s4] sm:$0x1]
  %v1346 = vmul.f32 %v1344, %v1345
  %v1347 = vld [vmem:[%s5] sm:$0x1]
  %v1348 = vadd.f32 %v1346, %v1347
  %v1349 = vld [vmem:[%s6] sm:$0xff]
  %v1350 = vld [vmem:[%s6 + $0x8] sm:$0xff]
  %v1351 = vld [vmem:[%s6 + $0x10] sm:$0xff]
  %v1352 = vld [vmem:[%s6 + $0x18] sm:$0xff]
  %v1353 = vld [vmem:[%s7] sm:$0x1]
  %v1355 = vsel %vm81, %v1348, 0
  %1357 = vmatprep.subr.mxu0 0.0
  %1358 = vmatpush1.msra.mxu0 %v1349
  %1359 = vmatprep.subr.mxu0 0.0
  %1360 = vmatpush1.msra.mxu0 %v1350
  %1361 = vmatprep.subr.mxu0 0.0
  %1362 = vmatpush1.msra.mxu0 %v1351
  %1363 = vmatprep.subr.mxu0 0.0
  %1364 = vmatpush1.msra.mxu0 %v1352
  %1365 = vmatprep.subr.mxu0 0.0
  %1366 = vmatpush1.msra.mxu0 0.0
  %1367 = vmatprep.subr.mxu0 0.0
  %1368 = vmatpush1.msra.mxu0 0.0
  %1369 = vmatprep.subr.mxu0 0.0
  %1370 = vmatpush1.msra.mxu0 0.0
  %1371 = vmatprep.subr.mxu0 0.0
  %1372 = vmatpush1.msra.mxu0 0.0
  %1373 = vmatprep.subr.mxu0 0.0
  %1374 = vmatpush1.msra.mxu0 0.0
  %1375 = vmatprep.subr.mxu0 0.0
  %1376 = vmatpush1.msra.mxu0 0.0
  %1377 = vmatprep.subr.mxu0 0.0
  %1378 = vmatpush1.msra.mxu0 0.0
  %1379 = vmatprep.subr.mxu0 0.0
  %1380 = vmatpush1.msra.mxu0 0.0
  %1381 = vmatprep.subr.mxu0 0.0
  %1382 = vmatpush1.msra.mxu0 0.0
  %1383 = vmatprep.subr.mxu0 0.0
  %1384 = vmatpush1.msra.mxu0 0.0
  %1385 = vmatprep.subr.mxu0 0.0
  %1386 = vmatpush1.msra.mxu0 0.0
  %1387 = vmatprep.subr.mxu0 0.0
  %1388 = vmatpush1.msra.mxu0 0.0
  %1389 = vmatprep.subr.mxu0 0.0
  %1390 = vmatpush1.msra.mxu0 0.0
  %1391 = vmatprep.subr.mxu0 0.0
  %1392 = vmatpush1.msra.mxu0 0.0
  %1393 = vmatprep.subr.mxu0 0.0
  %1394 = vmatpush1.msra.mxu0 0.0
  %1395 = vmatprep.subr.mxu0 0.0
  %1396 = vmatpush1.msra.mxu0 0.0
  %1397 = vmatprep.subr.mxu0 0.0
  %1398 = vmatpush1.msra.mxu0 0.0
  %1399 = vmatprep.subr.mxu0 0.0
  %1400 = vmatpush1.msra.mxu0 0.0
  %1401 = vmatprep.subr.mxu0 0.0
  %1402 = vmatpush1.msra.mxu0 0.0
  %1403 = vmatprep.subr.mxu0 0.0
  %1404 = vmatpush1.msra.mxu0 0.0
  %1405 = vmatprep.subr.mxu0 0.0
  %1406 = vmatpush1.msra.mxu0 0.0
  %1407 = vmatprep.subr.mxu0 0.0
  %1408 = vmatpush1.msra.mxu0 0.0
  %1409 = vmatprep.subr.mxu0 0.0
  %1410 = vmatpush1.msra.mxu0 0.0
  %1411 = vmatprep.subr.mxu0 0.0
  %1412 = vmatpush1.msra.mxu0 0.0
  %1413 = vmatprep.subr.mxu0 0.0
  %1414 = vmatpush1.msra.mxu0 0.0
  %1415 = vmatprep.subr.mxu0 0.0
  %1416 = vmatpush1.msra.mxu0 0.0
  %1417 = vmatprep.subr.mxu0 0.0
  %1418 = vmatpush1.msra.mxu0 0.0
  %1419 = vmatprep.subr.mxu0 0.0
  %1420 = vmatpush1.msra.mxu0 0.0
  %1421 = vmatprep.mubr.f32.mxu0 0.0
  %1422 = vmatmul.mubr.f32.gmra.mrb[0].mxu0 %v1355
  %v1423 = vpop.f32.mrb[0].mxu0
  %v1424 = vadd.f32 %v1353, %v1423
  %v1425 = vpop.f32.mrb[0].mxu0
  %1426 = vdwg.mxu0
  %v1427 = vmul.f32 %v1317, %v1317
  %v1428 = vmul.f32 %v1322, %v1322
  %v1429 = vmul.f32 %v1327, %v1327
  %v1430 = vsel %vm81, %v1427, 0.0
  %1431 = vadd.xlane.f32.xlu0 %v1430
  %v1432 = vpop.xlane.xlu0 %1431
  %v1433 = vsel %vm81, %v1428, 0.0
  %1434 = vadd.xlane.f32.xlu0 %v1433
  %v1435 = vpop.xlane.xlu0 %1434
  %v1436 = vsel %vm81, %v1429, 0.0
  %1437 = vadd.xlane.f32.xlu0 %v1436
  %v1438 = vpop.xlane.xlu0 %1437
  %v1439 = vmax.f32 %v1432, 1e-16
  %v1440 = vmax.f32 %v1435, 1e-16
  %v1441 = vmax.f32 %v1438, 1e-16
  %v1442 = vrsqrt.pop %v1439
  %v1443 = vrsqrt.pop %v1440
  %v1444 = vrsqrt.pop %v1441
  %v1445 = vmul.f32 %v1317, %v1442
  %v1446 = vmul.f32 %v1322, %v1443
  %v1447 = vmul.f32 %v1327, %v1444
  %v1449 = vsel %vm81, %v1445, 0
  %v1452 = vsel %vm81, %v1446, 0
  %v1455 = vsel %vm81, %v1447, 0
  %1457 = vmatprep.subr.mxu0 0.0
  %1458 = vmatpush1.xpose.msra.mxu0 %v1449
  %1459 = vmatprep.subr.mxu0 0.0
  %1460 = vmatpush1.xpose.msra.mxu0 %v1452
  %1461 = vmatprep.subr.mxu0 0.0
  %1462 = vmatpush1.xpose.msra.mxu0 %v1455
  %1463 = vmatprep.subr.mxu0 0.0
  %1464 = vmatpush1.xpose.msra.mxu0 0.0
  %1465 = vmatprep.subr.mxu0 0.0
  %1466 = vmatpush1.xpose.msra.mxu0 0.0
  %1467 = vmatprep.subr.mxu0 0.0
  %1468 = vmatpush1.xpose.msra.mxu0 0.0
  %1469 = vmatprep.subr.mxu0 0.0
  %1470 = vmatpush1.xpose.msra.mxu0 0.0
  %1471 = vmatprep.subr.mxu0 0.0
  %1472 = vmatpush1.xpose.msra.mxu0 0.0
  %1473 = vmatprep.subr.mxu0 0.0
  %1474 = vmatpush1.xpose.msra.mxu0 0.0
  %1475 = vmatprep.subr.mxu0 0.0
  %1476 = vmatpush1.xpose.msra.mxu0 0.0
  %1477 = vmatprep.subr.mxu0 0.0
  %1478 = vmatpush1.xpose.msra.mxu0 0.0
  %1479 = vmatprep.subr.mxu0 0.0
  %1480 = vmatpush1.xpose.msra.mxu0 0.0
  %1481 = vmatprep.subr.mxu0 0.0
  %1482 = vmatpush1.xpose.msra.mxu0 0.0
  %1483 = vmatprep.subr.mxu0 0.0
  %1484 = vmatpush1.xpose.msra.mxu0 0.0
  %1485 = vmatprep.subr.mxu0 0.0
  %1486 = vmatpush1.xpose.msra.mxu0 0.0
  %1487 = vmatprep.subr.mxu0 0.0
  %1488 = vmatpush1.xpose.msra.mxu0 0.0
  %1489 = vmatprep.subr.mxu0 0.0
  %1490 = vmatpush1.xpose.msra.mxu0 0.0
  %1491 = vmatprep.subr.mxu0 0.0
  %1492 = vmatpush1.xpose.msra.mxu0 0.0
  %1493 = vmatprep.subr.mxu0 0.0
  %1494 = vmatpush1.xpose.msra.mxu0 0.0
  %1495 = vmatprep.subr.mxu0 0.0
  %1496 = vmatpush1.xpose.msra.mxu0 0.0
  %1497 = vmatprep.subr.mxu0 0.0
  %1498 = vmatpush1.xpose.msra.mxu0 0.0
  %1499 = vmatprep.subr.mxu0 0.0
  %1500 = vmatpush1.xpose.msra.mxu0 0.0
  %1501 = vmatprep.subr.mxu0 0.0
  %1502 = vmatpush1.xpose.msra.mxu0 0.0
  %1503 = vmatprep.subr.mxu0 0.0
  %1504 = vmatpush1.xpose.msra.mxu0 0.0
  %1505 = vmatprep.subr.mxu0 0.0
  %1506 = vmatpush1.xpose.msra.mxu0 0.0
  %1507 = vmatprep.subr.mxu0 0.0
  %1508 = vmatpush1.xpose.msra.mxu0 0.0
  %1509 = vmatprep.subr.mxu0 0.0
  %1510 = vmatpush1.xpose.msra.mxu0 0.0
  %1511 = vmatprep.subr.mxu0 0.0
  %1512 = vmatpush1.xpose.msra.mxu0 0.0
  %1513 = vmatprep.subr.mxu0 0.0
  %1514 = vmatpush1.xpose.msra.mxu0 0.0
  %1515 = vmatprep.subr.mxu0 0.0
  %1516 = vmatpush1.xpose.msra.mxu0 0.0
  %1517 = vmatprep.subr.mxu0 0.0
  %1518 = vmatpush1.xpose.msra.mxu0 0.0
  %1519 = vmatprep.subr.mxu0 0.0
  %1520 = vmatpush1.xpose.msra.mxu0 0.0
  %1521 = vmatprep.mubr.f32.mxu0 0.0
  %1522 = vmatmul.mubr.f32.gmra.mrb[0].mxu0 %v1449
  %v1523 = vpop.f32.mrb[0].mxu0
  %v1524 = vadd.f32 0.0, %v1523
  %v1525 = vpop.f32.mrb[0].mxu0
  %1526 = vmatprep.mubr.f32.mxu0 0.0
  %1527 = vmatmul.mubr.f32.gmra.mrb[0].mxu0 %v1452
  %v1528 = vpop.f32.mrb[0].mxu0
  %v1529 = vadd.f32 0.0, %v1528
  %v1530 = vpop.f32.mrb[0].mxu0
  %1531 = vmatprep.mubr.f32.mxu0 0.0
  %1532 = vmatmul.mubr.f32.gmra.mrb[0].mxu0 %v1455
  %v1533 = vpop.f32.mrb[0].mxu0
  %v1534 = vadd.f32 0.0, %v1533
  %v1535 = vpop.f32.mrb[0].mxu0
  %1536 = vdwg.mxu0
  %v1537 = vld [vmem:[%s8] sm:$0xff]
  %v1538 = vld [vmem:[%s8 + $0x8] sm:$0xff]
  %v1539 = vld [vmem:[%s8 + $0x10] sm:$0xff]
  %v1540 = vmul.f32 %v1524, %v1537
  %v1541 = vmul.f32 %v1529, %v1538
  %v1542 = vmul.f32 %v1534, %v1539
  %vm1543 = vcmask 195584
  %v1544 = vsel %vm1543, %v1540, 0.0
  %1545 = vadd.xlane.f32.xlu0 %v1544
  %v1546 = vpop.xlane.xlu0 %1545
  %v1547 = vsel %vm1543, %v1541, 0.0
  %1548 = vadd.xlane.f32.xlu0 %v1547
  %v1549 = vpop.xlane.xlu0 %1548
  %v1550 = vsel %vm1543, %v1542, 0.0
  %1551 = vadd.xlane.f32.xlu0 %v1550
  %v1552 = vpop.xlane.xlu0 %1551
  %v1553 = vadd.f32 %v1546, %v1549
  %v1554 = vadd.f32 %v1553, %v1552
  %v1555 = vrot.slane %v1554, 4
  %v1556 = vadd.f32 %v1554, %v1555
  %v1557 = vrot.slane %v1556, 2
  %v1558 = vadd.f32 %v1556, %v1557
  %v1559 = vrot.slane %v1558, 1
  %v1560 = vadd.f32 %v1558, %v1559
  %v1561 = vmul.f32 %v1560, 0.05263158
  %vm1562 = vcmp.eq.s32.totalorder %v228, 10
  %v1563 = vsel %vm1562, %v1561, 0.0
  %v1564 = vadd.f32 %v1424, %v1563
  %vm1565 = vcmp.eq.s32.totalorder %v228, 11
  %v1566 = vsel %vm1565, %v358, 0.0
  %v1567 = vadd.f32 %v1564, %v1566
  %vm1568 = vcmp.eq.s32.totalorder %v228, 12
  %1570 = vset.pattern.permute.xlu0 0
  %1571 = vperm.xlu0 %1570, %v382
  %v1572 = vpop.permute.xlu0 %1571
  %v1574 = vsel %vm1568, %v1572, 0.0
  %v1575 = vadd.f32 %v1567, %v1574
  %1576 = vst [vmem:[%s9] sm:$0x1] %v1575
  // Predicated region
  $region38: #{feature_select_forward.1} parent=0 // pred_check
    _
  $region39: #{feature_select_forward.1} parent=0 // pred_check_branch
    %1578 = sbr.rel (0) target = $region41
  $region40: #{feature_select_forward.1} parent=0 // pred_region
    _
  $region41: #{feature_select_forward.1} parent=0 // pred_fallthru
    _
  // Predicated region
  $region42: #{feature_select_forward.1} parent=0 // pred_check
    _
  $region43: #{feature_select_forward.1} parent=0 // pred_check_branch
    %1580 = sbr.rel (0) target = $region45
  $region44: #{feature_select_forward.1} parent=0 // pred_region
    _
  $region45: #{feature_select_forward.1} parent=0 // pred_fallthru
    _

</llo_original>
